<compile_context>
chip_gen: v7x
topology: tpu7x:2x2x1
jax: 0.10.0
libtpu: 0.0.40
codegen_flags: <defaults>
</compile_context>

<pallas_src>
import functools

import jax
import jax.numpy as jnp
from jax.experimental import pallas as pl
from jax.experimental.pallas import tpu as pltpu


# ----------------------------------------------------------------------------
# Pallas kernel: 9-tap shifted-slice conv (+ pre-folded BN) + LeakyReLU(0.1)
# ----------------------------------------------------------------------------
def _conv_bn_lrelu_kernel(x_ref, w_ref, bias_ref, o_ref, *, taps, l_out):
    # x_ref:    (1, Cin, Lin)   flattened (Hp*Wp) padded image, one batch item
    # w_ref:    (9, Cout, Cin)  per-tap weights, BN scale already folded in
    # bias_ref: (Cout, 1)       folded BN bias = beta - mean * gamma / sqrt(var+eps)
    # o_ref:    (1, Cout, Lout) dense (stride-1) conv output, NC(H*Wp) layout
    x = x_ref[0]                                     # (Cin, Lin)
    cout = o_ref.shape[1]
    # Init accumulator with the broadcast bias (saves a separate epilogue add).
    acc = jnp.broadcast_to(bias_ref[...], (cout, l_out)).astype(jnp.float32)
    # 9 shifted-slice matmuls (one per (dy, dx) tap), accumulated in f32.
    # Shifts are static lane-axis slices; contraction over Cin runs on the
    # MXU; the result lands directly in (Cout, spatial) layout, i.e. NCHW
    # with the spatial axis on lanes -> lane-dense stores.
    for t, off in enumerate(taps):
        x_slice = x[:, off:off + l_out]              # (Cin, Lout), static slice
        acc = acc + jnp.dot(w_ref[t], x_slice,
                            preferred_element_type=jnp.float32)
    o_ref[0] = jnp.where(acc > 0, acc, 0.1 * acc).astype(o_ref.dtype)


# ----------------------------------------------------------------------------
# Wrapper reproducing _conv_bn.forward  (NCHW in, NCHW out)
# ----------------------------------------------------------------------------
@functools.partial(jax.jit, static_argnames=("stride", "compute_dtype"))
def conv_bn_forward(x_nchw, w_oihw, gamma, beta, run_mean, run_var,
                    stride=1, eps=1e-5, compute_dtype=jnp.float32):
    N, Cin, H, W = x_nchw.shape
    Cout = w_oihw.shape[0]
    kh = kw = 3
    Ho = (H + 2 - kh) // stride + 1
    Wo = (W + 2 - kw) // stride + 1

    # Halo pad only (rows: 1 top + 2 bottom so all 9 tap slices stay in
    # bounds, cols: 1 + 1).  Input stays NCHW; spatial is flattened so each
    # 3x3 tap (dy, dx) becomes a static flat offset of dy*Wp + dx.
    Hp, Wp = H + 3, W + 2
    xp = jnp.pad(x_nchw, ((0, 0), (0, 0), (1, 2), (1, 1)))
    xf = xp.reshape(N, Cin, Hp * Wp).astype(compute_dtype)

    # Fold BatchNorm (eval mode) into the conv: scale goes into the weights
    # (f32 constant folding on a tiny tensor), bias stays as a per-channel add.
    inv_std = jax.lax.rsqrt(run_var.astype(jnp.float32) + eps)
    scale = gamma.astype(jnp.float32) * inv_std                       # (Cout,)
    bias = (beta.astype(jnp.float32)
            - run_mean.astype(jnp.float32) * scale).reshape(Cout, 1)  # f32

    # (Cout, Cin, 3, 3) * scale -> (9, Cout, Cin): one small matrix per tap.
    w_scaled = w_oihw.astype(jnp.float32) * scale.reshape(Cout, 1, 1, 1)
    wt = jnp.transpose(w_scaled, (2, 3, 0, 1)).reshape(kh * kw, Cout, Cin)
    wt = wt.astype(compute_dtype)

    taps = tuple(dy * Wp + dx for dy in range(kh) for dx in range(kw))
    l_out = H * Wp   # dense stride-1 output: rows (H) x padded width (Wp)

    out_flat = pl.pallas_call(
        functools.partial(_conv_bn_lrelu_kernel, taps=taps, l_out=l_out),
        out_shape=jax.ShapeDtypeStruct((N, Cout, l_out), jnp.float32),
        grid_spec=pltpu.PrefetchScalarGridSpec(
            num_scalar_prefetch=0,
            grid=(N,),
            in_specs=[
                # one full (flattened, padded) image per grid step
                pl.BlockSpec((1, Cin, Hp * Wp), lambda n: (n, 0, 0)),
                # resident operands (index_map constant across the grid)
                pl.BlockSpec((kh * kw, Cout, Cin), lambda n: (0, 0, 0)),
                pl.BlockSpec((Cout, 1), lambda n: (0, 0)),
            ],
            out_specs=pl.BlockSpec((1, Cout, l_out), lambda n: (n, 0, 0)),
        ),
        compiler_params=pltpu.CompilerParams(
            dimension_semantics=("parallel",),
            vmem_limit_bytes=64 * 1024 * 1024),
    )(xf, wt, bias)

    # Dense output is (N, Cout, H, Wp); the 2 right-most columns of every row
    # are wrap garbage and are dropped here.  Strided convs subsample the
    # dense stride-1 result (kernel is stride-agnostic).
    y = out_flat.reshape(N, Cout, H, Wp)
    y = y[:, :, ::stride, ::stride][:, :, :Ho, :Wo]
    return y


# ----------------------------------------------------------------------------
# Pure-JAX reference (lax conv) for a sanity check
# ----------------------------------------------------------------------------
def conv_bn_reference(x_nchw, w_oihw, gamma, beta, run_mean, run_var,
                      stride=1, eps=1e-5):
    y = jax.lax.conv_general_dilated(
        x_nchw, w_oihw,
        window_strides=(stride, stride),
        padding=((1, 1), (1, 1)),
        dimension_numbers=("NCHW", "OIHW", "NCHW"))
    scale = (gamma / jnp.sqrt(run_var + eps)).reshape(1, -1, 1, 1)
    bias = (beta - run_mean * gamma / jnp.sqrt(run_var + eps)).reshape(1, -1, 1, 1)
    y = y * scale + bias
    return jnp.where(y > 0, y, 0.1 * y)


if __name__ == "__main__":
    key = jax.random.PRNGKey(0)
    k_x, k_w = jax.random.split(key)

    N, Cin, H, W = 2, 4, 16, 16
    Cout = 8

    x = jax.random.normal(k_x, (N, Cin, H, W), dtype=jnp.float32)
    w = jax.random.normal(k_w, (Cout, Cin, 3, 3), dtype=jnp.float32) * 0.1

    gamma = 1.0 + 0.1 * jnp.arange(Cout, dtype=jnp.float32)
    beta = 0.05 * jnp.arange(Cout, dtype=jnp.float32)
    run_mean = 0.01 * jnp.arange(Cout, dtype=jnp.float32)
    run_var = 1.0 + 0.02 * jnp.arange(Cout, dtype=jnp.float32)

    # --- stride=1, f32 compute (strict check) ---
    out = conv_bn_forward(x, w, gamma, beta, run_mean, run_var, stride=1)
    out = jax.block_until_ready(out)
    ref = conv_bn_reference(x, w, gamma, beta, run_mean, run_var, stride=1)
    assert out.shape == (N, Cout, H, W)
    assert jnp.allclose(out, ref, atol=1e-4, rtol=1e-4), \
        f"stride=1 f32 max err {jnp.max(jnp.abs(out - ref))}"

    # --- stride=2, f32 compute ---
    out2 = conv_bn_forward(x, w, gamma, beta, run_mean, run_var, stride=2)
    out2 = jax.block_until_ready(out2)
    ref2 = conv_bn_reference(x, w, gamma, beta, run_mean, run_var, stride=2)
    assert out2.shape == ref2.shape == (N, Cout, H // 2, W // 2)
    assert jnp.allclose(out2, ref2, atol=1e-4, rtol=1e-4), \
        f"stride=2 f32 max err {jnp.max(jnp.abs(out2 - ref2))}"

    # --- stride=1, bf16 MXU inputs / f32 accumulation (loose check) ---
    out_bf16 = conv_bn_forward(x, w, gamma, beta, run_mean, run_var,
                               stride=1, compute_dtype=jnp.bfloat16)
    out_bf16 = jax.block_until_ready(out_bf16)
    assert jnp.allclose(out_bf16, ref, atol=5e-2, rtol=5e-2), \
        f"stride=1 bf16 max err {jnp.max(jnp.abs(out_bf16 - ref))}"

    print("KERNEL_OK")
</pallas_src>

<mosaic_0001>
module attributes {stable_mosaic.version = 11 : i64} {
  func.func @_conv_bn_lrelu_kernel(%arg0: i32, %arg1: memref<1x4x342xf32, #tpu.memory_space<vmem>>, %arg2: memref<9x8x4xf32, #tpu.memory_space<vmem>>, %arg3: memref<8x1xf32, #tpu.memory_space<vmem>>, %arg4: memref<1x8x288xf32, #tpu.memory_space<vmem>>) attributes {dimension_semantics = [#tpu.dimension_semantics<parallel>], iteration_bounds = array<i64: 2>, scalar_prefetch = 0 : i64, scratch_operands = 0 : i64, tpu.core_type = #tpu.core_type<tc>, window_params = [{transform_indices = @transform_0, window_bounds = array<i64: 1, 4, 342>}, {pipeline_mode = #tpu.pipeline_mode<synchronous>, transform_indices = @transform_1, window_bounds = array<i64: 9, 8, 4>}, {pipeline_mode = #tpu.pipeline_mode<synchronous>, transform_indices = @transform_2, window_bounds = array<i64: 8, 1>}, {transform_indices = @transform_3, window_bounds = array<i64: 1, 8, 288>}]} {
    %c0 = arith.constant 0 : index
    %c0_0 = arith.constant 0 : index
    %c0_1 = arith.constant 0 : index
    %0 = vector.load %arg1[%c0, %c0_0, %c0_1] : memref<1x4x342xf32, #tpu.memory_space<vmem>>, vector<1x4x342xf32>
    %1 = vector.shape_cast %0 : vector<1x4x342xf32> to vector<4x342xf32>
    %c0_2 = arith.constant 0 : index
    %c0_3 = arith.constant 0 : index
    %2 = vector.load %arg3[%c0_2, %c0_3] : memref<8x1xf32, #tpu.memory_space<vmem>>, vector<8x1xf32>
    %3 = vector.shape_cast %2 : vector<8x1xf32> to vector<8x1xf32>
    %4 = vector.broadcast %3 : vector<8x1xf32> to vector<8x288xf32>
    %5 = vector.extract_strided_slice %1 {offsets = [0, 0], sizes = [4, 288], strides = [1, 1]} : vector<4x342xf32> to vector<4x288xf32>
    %c0_4 = arith.constant 0 : index
    %c0_5 = arith.constant 0 : index
    %c0_6 = arith.constant 0 : index
    %6 = vector.load %arg2[%c0_4, %c0_5, %c0_6] : memref<9x8x4xf32, #tpu.memory_space<vmem>>, vector<1x8x4xf32>
    %7 = vector.shape_cast %6 : vector<1x8x4xf32> to vector<8x4xf32>
    %cst = arith.constant dense<0.000000e+00> : vector<8x288xf32>
    %8 = tpu.matmul %7, %5, %cst {dimension_numbers = #tpu.dot_dimension_numbers<[1], [0], [0], [1], [0, 0, 1, 1], [], []>} : vector<8x4xf32>, vector<4x288xf32>, vector<8x288xf32> -> vector<8x288xf32>
    %9 = arith.addf %4, %8 : vector<8x288xf32>
    %10 = vector.extract_strided_slice %1 {offsets = [0, 1], sizes = [4, 288], strides = [1, 1]} : vector<4x342xf32> to vector<4x288xf32>
    %c1 = arith.constant 1 : index
    %c0_7 = arith.constant 0 : index
    %c0_8 = arith.constant 0 : index
    %11 = vector.load %arg2[%c1, %c0_7, %c0_8] : memref<9x8x4xf32, #tpu.memory_space<vmem>>, vector<1x8x4xf32>
    %12 = vector.shape_cast %11 : vector<1x8x4xf32> to vector<8x4xf32>
    %cst_9 = arith.constant dense<0.000000e+00> : vector<8x288xf32>
    %13 = tpu.matmul %12, %10, %cst_9 {dimension_numbers = #tpu.dot_dimension_numbers<[1], [0], [0], [1], [0, 0, 1, 1], [], []>} : vector<8x4xf32>, vector<4x288xf32>, vector<8x288xf32> -> vector<8x288xf32>
    %14 = arith.addf %9, %13 : vector<8x288xf32>
    %15 = vector.extract_strided_slice %1 {offsets = [0, 2], sizes = [4, 288], strides = [1, 1]} : vector<4x342xf32> to vector<4x288xf32>
    %c2 = arith.constant 2 : index
    %c0_10 = arith.constant 0 : index
    %c0_11 = arith.constant 0 : index
    %16 = vector.load %arg2[%c2, %c0_10, %c0_11] : memref<9x8x4xf32, #tpu.memory_space<vmem>>, vector<1x8x4xf32>
    %17 = vector.shape_cast %16 : vector<1x8x4xf32> to vector<8x4xf32>
    %cst_12 = arith.constant dense<0.000000e+00> : vector<8x288xf32>
    %18 = tpu.matmul %17, %15, %cst_12 {dimension_numbers = #tpu.dot_dimension_numbers<[1], [0], [0], [1], [0, 0, 1, 1], [], []>} : vector<8x4xf32>, vector<4x288xf32>, vector<8x288xf32> -> vector<8x288xf32>
    %19 = arith.addf %14, %18 : vector<8x288xf32>
    %20 = vector.extract_strided_slice %1 {offsets = [0, 18], sizes = [4, 288], strides = [1, 1]} : vector<4x342xf32> to vector<4x288xf32>
    %c3 = arith.constant 3 : index
    %c0_13 = arith.constant 0 : index
    %c0_14 = arith.constant 0 : index
    %21 = vector.load %arg2[%c3, %c0_13, %c0_14] : memref<9x8x4xf32, #tpu.memory_space<vmem>>, vector<1x8x4xf32>
    %22 = vector.shape_cast %21 : vector<1x8x4xf32> to vector<8x4xf32>
    %cst_15 = arith.constant dense<0.000000e+00> : vector<8x288xf32>
    %23 = tpu.matmul %22, %20, %cst_15 {dimension_numbers = #tpu.dot_dimension_numbers<[1], [0], [0], [1], [0, 0, 1, 1], [], []>} : vector<8x4xf32>, vector<4x288xf32>, vector<8x288xf32> -> vector<8x288xf32>
    %24 = arith.addf %19, %23 : vector<8x288xf32>
    %25 = vector.extract_strided_slice %1 {offsets = [0, 19], sizes = [4, 288], strides = [1, 1]} : vector<4x342xf32> to vector<4x288xf32>
    %c4 = arith.constant 4 : index
    %c0_16 = arith.constant 0 : index
    %c0_17 = arith.constant 0 : index
    %26 = vector.load %arg2[%c4, %c0_16, %c0_17] : memref<9x8x4xf32, #tpu.memory_space<vmem>>, vector<1x8x4xf32>
    %27 = vector.shape_cast %26 : vector<1x8x4xf32> to vector<8x4xf32>
    %cst_18 = arith.constant dense<0.000000e+00> : vector<8x288xf32>
    %28 = tpu.matmul %27, %25, %cst_18 {dimension_numbers = #tpu.dot_dimension_numbers<[1], [0], [0], [1], [0, 0, 1, 1], [], []>} : vector<8x4xf32>, vector<4x288xf32>, vector<8x288xf32> -> vector<8x288xf32>
    %29 = arith.addf %24, %28 : vector<8x288xf32>
    %30 = vector.extract_strided_slice %1 {offsets = [0, 20], sizes = [4, 288], strides = [1, 1]} : vector<4x342xf32> to vector<4x288xf32>
    %c5 = arith.constant 5 : index
    %c0_19 = arith.constant 0 : index
    %c0_20 = arith.constant 0 : index
    %31 = vector.load %arg2[%c5, %c0_19, %c0_20] : memref<9x8x4xf32, #tpu.memory_space<vmem>>, vector<1x8x4xf32>
    %32 = vector.shape_cast %31 : vector<1x8x4xf32> to vector<8x4xf32>
    %cst_21 = arith.constant dense<0.000000e+00> : vector<8x288xf32>
    %33 = tpu.matmul %32, %30, %cst_21 {dimension_numbers = #tpu.dot_dimension_numbers<[1], [0], [0], [1], [0, 0, 1, 1], [], []>} : vector<8x4xf32>, vector<4x288xf32>, vector<8x288xf32> -> vector<8x288xf32>
    %34 = arith.addf %29, %33 : vector<8x288xf32>
    %35 = vector.extract_strided_slice %1 {offsets = [0, 36], sizes = [4, 288], strides = [1, 1]} : vector<4x342xf32> to vector<4x288xf32>
    %c6 = arith.constant 6 : index
    %c0_22 = arith.constant 0 : index
    %c0_23 = arith.constant 0 : index
    %36 = vector.load %arg2[%c6, %c0_22, %c0_23] : memref<9x8x4xf32, #tpu.memory_space<vmem>>, vector<1x8x4xf32>
    %37 = vector.shape_cast %36 : vector<1x8x4xf32> to vector<8x4xf32>
    %cst_24 = arith.constant dense<0.000000e+00> : vector<8x288xf32>
    %38 = tpu.matmul %37, %35, %cst_24 {dimension_numbers = #tpu.dot_dimension_numbers<[1], [0], [0], [1], [0, 0, 1, 1], [], []>} : vector<8x4xf32>, vector<4x288xf32>, vector<8x288xf32> -> vector<8x288xf32>
    %39 = arith.addf %34, %38 : vector<8x288xf32>
    %40 = vector.extract_strided_slice %1 {offsets = [0, 37], sizes = [4, 288], strides = [1, 1]} : vector<4x342xf32> to vector<4x288xf32>
    %c7 = arith.constant 7 : index
    %c0_25 = arith.constant 0 : index
    %c0_26 = arith.constant 0 : index
    %41 = vector.load %arg2[%c7, %c0_25, %c0_26] : memref<9x8x4xf32, #tpu.memory_space<vmem>>, vector<1x8x4xf32>
    %42 = vector.shape_cast %41 : vector<1x8x4xf32> to vector<8x4xf32>
    %cst_27 = arith.constant dense<0.000000e+00> : vector<8x288xf32>
    %43 = tpu.matmul %42, %40, %cst_27 {dimension_numbers = #tpu.dot_dimension_numbers<[1], [0], [0], [1], [0, 0, 1, 1], [], []>} : vector<8x4xf32>, vector<4x288xf32>, vector<8x288xf32> -> vector<8x288xf32>
    %44 = arith.addf %39, %43 : vector<8x288xf32>
    %45 = vector.extract_strided_slice %1 {offsets = [0, 38], sizes = [4, 288], strides = [1, 1]} : vector<4x342xf32> to vector<4x288xf32>
    %c8 = arith.constant 8 : index
    %c0_28 = arith.constant 0 : index
    %c0_29 = arith.constant 0 : index
    %46 = vector.load %arg2[%c8, %c0_28, %c0_29] : memref<9x8x4xf32, #tpu.memory_space<vmem>>, vector<1x8x4xf32>
    %47 = vector.shape_cast %46 : vector<1x8x4xf32> to vector<8x4xf32>
    %cst_30 = arith.constant dense<0.000000e+00> : vector<8x288xf32>
    %48 = tpu.matmul %47, %45, %cst_30 {dimension_numbers = #tpu.dot_dimension_numbers<[1], [0], [0], [1], [0, 0, 1, 1], [], []>} : vector<8x4xf32>, vector<4x288xf32>, vector<8x288xf32> -> vector<8x288xf32>
    %49 = arith.addf %44, %48 : vector<8x288xf32>
    %cst_31 = arith.constant 0.000000e+00 : f32
    %50 = vector.broadcast %cst_31 : f32 to vector<8x288xf32>
    %51 = arith.cmpf ogt, %49, %50 : vector<8x288xf32>
    %cst_32 = arith.constant 1.000000e-01 : f32
    %52 = vector.broadcast %cst_32 : f32 to vector<8x288xf32>
    %53 = arith.mulf %52, %49 : vector<8x288xf32>
    %54 = arith.select %51, %49, %53 : vector<8x288xi1>, vector<8x288xf32>
    %c0_33 = arith.constant 0 : index
    %c0_34 = arith.constant 0 : index
    %c0_35 = arith.constant 0 : index
    %55 = vector.load %arg4[%c0_33, %c0_34, %c0_35] : memref<1x8x288xf32, #tpu.memory_space<vmem>>, vector<1x8x288xf32>
    %56 = vector.shape_cast %55 : vector<1x8x288xf32> to vector<8x288xf32>
    %57 = vector.shape_cast %54 : vector<8x288xf32> to vector<1x8x288xf32>
    tpu.vector_store %arg4[%c0_33, %c0_34, %c0_35], %57 {strides = array<i32>} : memref<1x8x288xf32, #tpu.memory_space<vmem>>, vector<1x8x288xf32>,
    return
  }
  func.func @transform_0(%arg0: i32) -> (i32, i32, i32) {
    %c0_i32 = arith.constant 0 : i32
    %c0_i32_0 = arith.constant 0 : i32
    %c0_i32_1 = arith.constant 0 : i32
    return %arg0, %c0_i32, %c0_i32_0 : i32, i32, i32
  }
  func.func @transform_1(%arg0: i32) -> (i32, i32, i32) {
    %c0_i32 = arith.constant 0 : i32
    %c0_i32_0 = arith.constant 0 : i32
    %c0_i32_1 = arith.constant 0 : i32
    %c0_i32_2 = arith.constant 0 : i32
    return %c0_i32, %c0_i32_0, %c0_i32_1 : i32, i32, i32
  }
  func.func @transform_2(%arg0: i32) -> (i32, i32) {
    %c0_i32 = arith.constant 0 : i32
    %c0_i32_0 = arith.constant 0 : i32
    %c0_i32_1 = arith.constant 0 : i32
    return %c0_i32, %c0_i32_0 : i32, i32
  }
  func.func @transform_3(%arg0: i32) -> (i32, i32, i32) {
    %c0_i32 = arith.constant 0 : i32
    %c0_i32_0 = arith.constant 0 : i32
    %c0_i32_1 = arith.constant 0 : i32
    return %arg0, %c0_i32, %c0_i32_0 : i32, i32, i32
  }
}

</mosaic_0001>

<llo_original>
// kernel: conv_bn_forward.1
$region0: #{conv_bn_forward.1}
  #allocation0 [shape = 'u32[]', space=smem, size = 0x4, offset = 0x4, fixed_abs, tag = 'smem constant byte address 0x4 - core index']
  #allocation1 [shape = 'u32[144,128]{1,0:T(1,128)}', space=vmem, size = 0x12000, scoped, tag = 'internal scratch']
  %s0 = inlined_call_operand.hbm [shape: f32[2,4,342], index: 0, kind: input, shape index: {}]
  %s1 = inlined_call_operand.hbm [shape: f32[9,8,4], index: 1, kind: input, shape index: {}]
  %s2 = inlined_call_operand.hbm [shape: f32[8,1], index: 2, kind: input, shape index: {}]
  %s3 = inlined_call_operand.hbm [shape: f32[2,8,288], index: 3, kind: output, shape index: {}]
  %s4 = sld [smem:[#allocation0]]
  $region57: #{conv_bn_forward.1} parent=0
    _
  %s6 = ssub.s32 1, %s4
  %s7 = scalar_select 0, %s6, %s4
  $region1: #{conv_bn_forward.1} parent=0
    #allocation2 [shape = 'u8[12288]{0}', space=vmem, size = 0x3000, scoped, tag = 'input window, operand 0']
    #allocation3 [shape = 's32[2]{0}', space=sflag, size = 0x8, scoped, tag = 'scoped memory for conv_bn_forward.1']
    #allocation4 [shape = 's32[2]{0}', space=sflag, size = 0x8, scoped, tag = 'scoped memory for conv_bn_forward.1']
    #allocation5 [shape = 'u8[36864]{0}', space=vmem, size = 0x9000, scoped, tag = 'input window, operand 1, single buffered']
    #allocation6 [shape = 's32[1]{0}', space=sflag, size = 0x4, scoped, tag = 'scoped memory for conv_bn_forward.1']
    #allocation7 [shape = 'u8[4096]{0}', space=vmem, size = 0x1000, scoped, tag = 'input window, operand 2, single buffered']
    #allocation8 [shape = 'u8[24576]{0}', space=vmem, size = 0x6000, scoped, tag = 'output window, operand 0']
    %8 = vsyncpa [#allocation3], 0
    %s9 = scalar_lea.sflag [#allocation3], 1
    %10 = vsyncpa %s9, 0
    %11 = vsyncpa [#allocation6], 0
    %12 = vsyncpa [#allocation4], 0
    %s13 = scalar_lea.sflag [#allocation4], 1
    %14 = vsyncpa %s13, 0
    loop: start=0, step=1, limit=4
    $region2: #{conv_bn_forward.1} parent=1 // loop_pre_header
      _
    $region3: #{conv_bn_forward.1} parent=1 // loop_header
      %s16 = sphi 0, %s20
      %p17 = scmp.ge.s32.totalorder %s16, 4
      %s26 = sphi 0, %s28
      %s29 = sphi 0, %s26
      %s30 = sphi 0, %s29
      %s46 = sphi 0, %s30
      %s50 = sphi 0, %s50
      %s52 = sphi 0, %s50
      %s53 = sphi 0, %s52
      %s67 = sphi 0, %s53
      %s71 = sphi 0, %s71
      %s73 = sphi 0, %s71
      %s74 = sphi 0, %s73
      %s88 = sphi 0, %s74
      %s94 = sphi 0, %s96
      %s97 = sphi 0, %s94
      %s98 = sphi 0, %s97
      %s114 = sphi 0, %s98
    $region4: #{conv_bn_forward.1} parent=1 // loop_header_branch
      %19 = sbr.rel (%p17) target = $region8
    $region5: #{conv_bn_forward.1} parent=1 // loop_body
      %s21 = ssub.s32 %s16, 1
      %s22 = ssub.s32 %s16, 2
      %s23 = sadd.s32 %s16, 1
      %s24 = ssub.s32 %s16, %s23
      %p25 = scmp.eq.s32.totalorder %s24, 0
      %s27 = sadd.s32 %s26, 1
      %s28 = scalar_select %p25, %s26, %s27
      %p31 = pneg %p25
      %p32 = scmp.eq.s32.totalorder %s16, 1
      %p33 = por %p31, %p32
      %p34 = scmp.ne.s32.totalorder %s26, %s29
      %p35 = scmp.eq.s32.totalorder %s16, 0
      %p36 = por %p34, %p35
      %p37 = scmp.ne.s32.totalorder %s26, %s29
      %p38 = scmp.eq.s32.totalorder %s21, 1
      %p39 = por %p37, %p38
      %p40 = scmp.ne.s32.totalorder %s29, %s30
      %p41 = scmp.eq.s32.totalorder %s21, 0
      %p42 = por %p40, %p41
      %p43 = scmp.ne.s32.totalorder %s29, %s30
      %p44 = scmp.eq.s32.totalorder %s22, 1
      %p45 = por %p43, %p44
      %p47 = scmp.ne.s32.totalorder %s30, %s46
      %p48 = scmp.eq.s32.totalorder %s22, 0
      %p49 = por %p47, %p48
      %s51 = sadd.s32 %s50, 1
      %p54 = scmp.eq.s32.totalorder %s16, 1
      %p55 = scmp.ne.s32.totalorder %s50, %s52
      %p56 = scmp.eq.s32.totalorder %s16, 0
      %p57 = por %p55, %p56
      %p58 = scmp.ne.s32.totalorder %s50, %s52
      %p59 = scmp.eq.s32.totalorder %s21, 1
      %p60 = por %p58, %p59
      %p61 = scmp.ne.s32.totalorder %s52, %s53
      %p62 = scmp.eq.s32.totalorder %s21, 0
      %p63 = por %p61, %p62
      %p64 = scmp.ne.s32.totalorder %s52, %s53
      %p65 = scmp.eq.s32.totalorder %s22, 1
      %p66 = por %p64, %p65
      %p68 = scmp.ne.s32.totalorder %s53, %s67
      %p69 = scmp.eq.s32.totalorder %s22, 0
      %p70 = por %p68, %p69
      %s72 = sadd.s32 %s71, 1
      %p75 = scmp.eq.s32.totalorder %s16, 1
      %p76 = scmp.ne.s32.totalorder %s71, %s73
      %p77 = scmp.eq.s32.totalorder %s16, 0
      %p78 = por %p76, %p77
      %p79 = scmp.ne.s32.totalorder %s71, %s73
      %p80 = scmp.eq.s32.totalorder %s21, 1
      %p81 = por %p79, %p80
      %p82 = scmp.ne.s32.totalorder %s73, %s74
      %p83 = scmp.eq.s32.totalorder %s21, 0
      %p84 = por %p82, %p83
      %p85 = scmp.ne.s32.totalorder %s73, %s74
      %p86 = scmp.eq.s32.totalorder %s22, 1
      %p87 = por %p85, %p86
      %p89 = scmp.ne.s32.totalorder %s74, %s88
      %p90 = scmp.eq.s32.totalorder %s22, 0
      %p91 = por %p89, %p90
      %s92 = ssub.s32 %s16, %s23
      %p93 = scmp.eq.s32.totalorder %s92, 0
      %s95 = sadd.s32 %s94, 1
      %s96 = scalar_select %p93, %s94, %s95
      %p99 = pneg %p93
      %p100 = scmp.eq.s32.totalorder %s16, 1
      %p101 = por %p99, %p100
      %p102 = scmp.ne.s32.totalorder %s94, %s97
      %p103 = scmp.eq.s32.totalorder %s16, 0
      %p104 = por %p102, %p103
      %p105 = scmp.ne.s32.totalorder %s94, %s97
      %p106 = scmp.eq.s32.totalorder %s21, 1
      %p107 = por %p105, %p106
      %p108 = scmp.ne.s32.totalorder %s97, %s98
      %p109 = scmp.eq.s32.totalorder %s21, 0
      %p110 = por %p108, %p109
      %p111 = scmp.ne.s32.totalorder %s97, %s98
      %p112 = scmp.eq.s32.totalorder %s22, 1
      %p113 = por %p111, %p112
      %p115 = scmp.ne.s32.totalorder %s98, %s114
      %p116 = scmp.eq.s32.totalorder %s22, 0
      %p117 = por %p115, %p116
      %p118 = scmp.le.s32.totalorder 1, %s16
      %p119 = scmp.lt.s32.totalorder %s16, 3
      %p120 = pnand %p118, %p119
      %p121 = pneg %p120
      // Predicated region
      $region9: #{conv_bn_forward.1} parent=5 // pred_check
        _
      $region10: #{conv_bn_forward.1} parent=5 // pred_check_branch
        %123 = sbr.rel (%p120) target = $region12
      $region11: #{conv_bn_forward.1} parent=5 // pred_region
        %s124 = ssub.s32 %s16, 1
        // Predicated region
        $region13: #{conv_bn_forward.1} parent=11 // pred_check
          %p125 = pneg %p63
        $region14: #{conv_bn_forward.1} parent=11 // pred_check_branch
          %127 = sbr.rel (%p125) target = $region16
        $region15: #{conv_bn_forward.1} parent=11 // pred_region
          %s129 = ssub.s32 1152, 1152
          %130 = vsyncadd [#allocation6], %s129
          %s131 = sshll.u32 [#allocation5], 4
          %s132 = int_to_ptr.vmem [resolvable:$true] %s131
          %137 = dma.hbm_to_vmem [thread:$0]  %s1, 1152, %s132, [#allocation6], 128, 128, 8
        $region16: #{conv_bn_forward.1} parent=11 // pred_fallthru
          _
        // Predicated region
        $region17: #{conv_bn_forward.1} parent=11 // pred_check
          %p138 = pneg %p84
        $region18: #{conv_bn_forward.1} parent=11 // pred_check_branch
          %140 = sbr.rel (%p138) target = $region20
        $region19: #{conv_bn_forward.1} parent=11 // pred_region
          %s142 = ssub.s32 128, 128
          %143 = vsyncadd [#allocation6], %s142
          %s145 = sshll.u32 [#allocation7], 4
          %s146 = int_to_ptr.vmem [resolvable:$true] %s145
          %148 = dma.hbm_to_vmem [thread:$0]  %s2, 128, %s146, [#allocation6]
        $region20: #{conv_bn_forward.1} parent=11 // pred_fallthru
          _
      $region12: #{conv_bn_forward.1} parent=5 // pred_fallthru
        _
      %p149 = scmp.lt.s32.totalorder %s16, 2
      // Predicated region
      $region21: #{conv_bn_forward.1} parent=5 // pred_check
        %p150 = pneg %p149
      $region22: #{conv_bn_forward.1} parent=5 // pred_check_branch
        %152 = sbr.rel (%p150) target = $region24
      $region23: #{conv_bn_forward.1} parent=5 // pred_region
        // Predicated region
        $region25: #{conv_bn_forward.1} parent=23 // pred_check
          %p153 = pneg %p36
        $region26: #{conv_bn_forward.1} parent=23 // pred_check_branch
          %155 = sbr.rel (%p153) target = $region28
        $region27: #{conv_bn_forward.1} parent=23 // pred_region
          %s156 = sand.u32 %s26, 1
          %s157 = scalar_lea.sflag [#allocation3], %s156
          %s158 = sand.u32 %s26, 1
          %s159 = smul.addr %s158, 12
          %s160 = scalar_lea.vmem [#allocation2], %s159
          %s162 = ssub.s32 192, 192
          %163 = vsyncadd %s157, %s162
          %s164 = smul.addr %s16, 3
          %s165 = smul.addr %s164, 64
          %s166 = scalar_lea.hbm %s0, %s165
          %s168 = sshll.u32 %s160, 4
          %s169 = int_to_ptr.vmem [resolvable:$true] %s168
          %171 = dma.hbm_to_vmem [thread:$0]  %s166, 192, %s169, %s157
        $region28: #{conv_bn_forward.1} parent=23 // pred_fallthru
          _
      $region24: #{conv_bn_forward.1} parent=5 // pred_fallthru
        _
      %p172 = scmp.le.s32.totalorder 1, %s16
      %p173 = scmp.lt.s32.totalorder %s16, 3
      %p174 = pnand %p172, %p173
      %p175 = pneg %p174
      // Predicated region
      $region29: #{conv_bn_forward.1} parent=5 // pred_check
        _
      $region30: #{conv_bn_forward.1} parent=5 // pred_check_branch
        %177 = sbr.rel (%p174) target = $region32
      $region31: #{conv_bn_forward.1} parent=5 // pred_region
        %s178 = ssub.s32 %s16, 1
        %s179 = sand.u32 %s29, 1
        %s180 = scalar_lea.sflag [#allocation3], %s179
        %s181 = sand.u32 %s29, 1
        %s182 = smul.addr %s181, 12
        %s183 = scalar_lea.vmem [#allocation2], %s182
        // Predicated region
        $region33: #{conv_bn_forward.1} parent=31 // pred_check
          %p184 = pneg %p42
        $region34: #{conv_bn_forward.1} parent=31 // pred_check_branch
          %186 = sbr.rel (%p184) target = $region36
        $region35: #{conv_bn_forward.1} parent=31 // pred_region
          %187 = dma.done %s180, 192
        $region36: #{conv_bn_forward.1} parent=31 // pred_fallthru
          _
        // Predicated region
        $region37: #{conv_bn_forward.1} parent=31 // pred_check
          %p188 = pneg %p63
        $region38: #{conv_bn_forward.1} parent=31 // pred_check_branch
          %190 = sbr.rel (%p188) target = $region40
        $region39: #{conv_bn_forward.1} parent=31 // pred_region
          %191 = dma.done [#allocation6], 1152
        $region40: #{conv_bn_forward.1} parent=31 // pred_fallthru
          _
        // Predicated region
        $region41: #{conv_bn_forward.1} parent=31 // pred_check
          %p192 = pneg %p84
        $region42: #{conv_bn_forward.1} parent=31 // pred_check_branch
          %194 = sbr.rel (%p192) target = $region44
        $region43: #{conv_bn_forward.1} parent=31 // pred_region
          %195 = dma.done [#allocation6], 128
        $region44: #{conv_bn_forward.1} parent=31 // pred_fallthru
          _
        %s196 = sand.u32 %s29, 1
        %s197 = scalar_lea.sflag [#allocation3], %s196
        %s198 = sand.u32 %s29, 1
        %s199 = smul.addr %s198, 12
        %s200 = scalar_lea.vmem [#allocation2], %s199
        %p201 = pneg %p42
        %p202 = pneg %p39
        %p203 = pneg %p63
        %p204 = pneg %p60
        %p205 = pneg %p84
        %p206 = pneg %p81
        %p207 = pneg %p110
        %p208 = pneg %p107
        %s209 = sand.u32 %s97, 1
        %s210 = scalar_lea.sflag [#allocation4], %s209
        %s211 = sand.u32 %s97, 1
        %s212 = smul.addr %s211, 24
        %s213 = scalar_lea.vmem [#allocation8], %s212
        %v214 = vld [vmem:[%s183] sm:$0xff]
        %v215 = vld [vmem:[%s183 + $0x8] sm:$0xf]
        %v216 = vld [vmem:[#allocation7] sm:$0xff]
        %218 = vset.pattern.permute.xlu0 0
        %219 = vperm.xlu0 %218, %v216
        %v220 = vpop.permute.xlu0 %219
        %v222 = vld [vmem:[#allocation5] sm:$0xff]
        %v225 = vcombine.high %v214, %v214
        %vm226 = vcmask 31744
        %v228 = vsel %vm226, %v222, 0
        %vm230 = vcmask 1043456
        %v231 = vsel %vm230, %v214, 0
        %v233 = vsel %vm230, %v225, 0
        %v235 = vsel %vm230, %v215, 0
        %237 = vmatprep.subr.mxu0 %v233
        %238 = vmatpush1.msra.mxu0 %v231
        %239 = vmatprep.subr.mxu0 0.0
        %240 = vmatpush1.msra.mxu0 0.0
        %241 = vmatprep.subr.mxu0 0.0
        %242 = vmatpush1.msra.mxu0 0.0
        %243 = vmatprep.subr.mxu0 0.0
        %244 = vmatpush1.msra.mxu0 0.0
        %245 = vmatprep.subr.mxu0 0.0
        %246 = vmatpush1.msra.mxu0 0.0
        %247 = vmatprep.subr.mxu0 0.0
        %248 = vmatpush1.msra.mxu0 0.0
        %249 = vmatprep.subr.mxu0 0.0
        %250 = vmatpush1.msra.mxu0 0.0
        %251 = vmatprep.subr.mxu0 0.0
        %252 = vmatpush1.msra.mxu0 0.0
        %253 = vmatprep.subr.mxu0 0.0
        %254 = vmatpush1.msra.mxu0 0.0
        %255 = vmatprep.subr.mxu0 0.0
        %256 = vmatpush1.msra.mxu0 0.0
        %257 = vmatprep.subr.mxu0 0.0
        %258 = vmatpush1.msra.mxu0 0.0
        %259 = vmatprep.subr.mxu0 0.0
        %260 = vmatpush1.msra.mxu0 0.0
        %261 = vmatprep.subr.mxu0 0.0
        %262 = vmatpush1.msra.mxu0 0.0
        %263 = vmatprep.subr.mxu0 0.0
        %264 = vmatpush1.msra.mxu0 0.0
        %265 = vmatprep.subr.mxu0 0.0
        %266 = vmatpush1.msra.mxu0 0.0
        %267 = vmatprep.subr.mxu0 0.0
        %268 = vmatpush1.msra.mxu0 0.0
        %269 = vmatprep.subr.mxu0 0.0
        %270 = vmatpush1.msra.mxu0 0.0
        %271 = vmatprep.subr.mxu0 0.0
        %272 = vmatpush1.msra.mxu0 0.0
        %273 = vmatprep.subr.mxu0 0.0
        %274 = vmatpush1.msra.mxu0 0.0
        %275 = vmatprep.subr.mxu0 0.0
        %276 = vmatpush1.msra.mxu0 0.0
        %277 = vmatprep.subr.mxu0 0.0
        %278 = vmatpush1.msra.mxu0 0.0
        %279 = vmatprep.subr.mxu0 0.0
        %280 = vmatpush1.msra.mxu0 0.0
        %281 = vmatprep.subr.mxu0 0.0
        %282 = vmatpush1.msra.mxu0 0.0
        %283 = vmatprep.subr.mxu0 0.0
        %284 = vmatpush1.msra.mxu0 0.0
        %285 = vmatprep.subr.mxu0 0.0
        %286 = vmatpush1.msra.mxu0 0.0
        %287 = vmatprep.subr.mxu0 0.0
        %288 = vmatpush1.msra.mxu0 0.0
        %289 = vmatprep.subr.mxu0 0.0
        %290 = vmatpush1.msra.mxu0 0.0
        %291 = vmatprep.subr.mxu0 0.0
        %292 = vmatpush1.msra.mxu0 0.0
        %293 = vmatprep.subr.mxu0 0.0
        %294 = vmatpush1.msra.mxu0 0.0
        %295 = vmatprep.subr.mxu0 0.0
        %296 = vmatpush1.msra.mxu0 0.0
        %297 = vmatprep.subr.mxu0 0.0
        %298 = vmatpush1.msra.mxu0 0.0
        %299 = vmatprep.subr.mxu0 0.0
        %300 = vmatpush1.msra.mxu0 0.0
        %301 = vmatprep.mubr.f32.mxu0 0.0
        %302 = vmatmul.mubr.f32.gmra.mrb[0].mxu0 %v228
        %v303 = vpop.f32.mrb[0].mxu0
        %v304 = vadd.f32 0.0, %v303
        %v305 = vpop.f32.mrb[0].mxu0
        %v306 = vadd.f32 0.0, %v305
        %307 = vdwg.mxu0
        %308 = vmatprep.subr.mxu0 0.0
        %309 = vmatpush1.msra.mxu0 %v235
        %310 = vmatprep.subr.mxu0 0.0
        %311 = vmatpush1.msra.mxu0 0.0
        %312 = vmatprep.subr.mxu0 0.0
        %313 = vmatpush1.msra.mxu0 0.0
        %314 = vmatprep.subr.mxu0 0.0
        %315 = vmatpush1.msra.mxu0 0.0
        %316 = vmatprep.subr.mxu0 0.0
        %317 = vmatpush1.msra.mxu0 0.0
        %318 = vmatprep.subr.mxu0 0.0
        %319 = vmatpush1.msra.mxu0 0.0
        %320 = vmatprep.subr.mxu0 0.0
        %321 = vmatpush1.msra.mxu0 0.0
        %322 = vmatprep.subr.mxu0 0.0
        %323 = vmatpush1.msra.mxu0 0.0
        %324 = vmatprep.subr.mxu0 0.0
        %325 = vmatpush1.msra.mxu0 0.0
        %326 = vmatprep.subr.mxu0 0.0
        %327 = vmatpush1.msra.mxu0 0.0
        %328 = vmatprep.subr.mxu0 0.0
        %329 = vmatpush1.msra.mxu0 0.0
        %330 = vmatprep.subr.mxu0 0.0
        %331 = vmatpush1.msra.mxu0 0.0
        %332 = vmatprep.subr.mxu0 0.0
        %333 = vmatpush1.msra.mxu0 0.0
        %334 = vmatprep.subr.mxu0 0.0
        %335 = vmatpush1.msra.mxu0 0.0
        %336 = vmatprep.subr.mxu0 0.0
        %337 = vmatpush1.msra.mxu0 0.0
        %338 = vmatprep.subr.mxu0 0.0
        %339 = vmatpush1.msra.mxu0 0.0
        %340 = vmatprep.subr.mxu0 0.0
        %341 = vmatpush1.msra.mxu0 0.0
        %342 = vmatprep.subr.mxu0 0.0
        %343 = vmatpush1.msra.mxu0 0.0
        %344 = vmatprep.subr.mxu0 0.0
        %345 = vmatpush1.msra.mxu0 0.0
        %346 = vmatprep.subr.mxu0 0.0
        %347 = vmatpush1.msra.mxu0 0.0
        %348 = vmatprep.subr.mxu0 0.0
        %349 = vmatpush1.msra.mxu0 0.0
        %350 = vmatprep.subr.mxu0 0.0
        %351 = vmatpush1.msra.mxu0 0.0
        %352 = vmatprep.subr.mxu0 0.0
        %353 = vmatpush1.msra.mxu0 0.0
        %354 = vmatprep.subr.mxu0 0.0
        %355 = vmatpush1.msra.mxu0 0.0
        %356 = vmatprep.subr.mxu0 0.0
        %357 = vmatpush1.msra.mxu0 0.0
        %358 = vmatprep.subr.mxu0 0.0
        %359 = vmatpush1.msra.mxu0 0.0
        %360 = vmatprep.subr.mxu0 0.0
        %361 = vmatpush1.msra.mxu0 0.0
        %362 = vmatprep.subr.mxu0 0.0
        %363 = vmatpush1.msra.mxu0 0.0
        %364 = vmatprep.subr.mxu0 0.0
        %365 = vmatpush1.msra.mxu0 0.0
        %366 = vmatprep.subr.mxu0 0.0
        %367 = vmatpush1.msra.mxu0 0.0
        %368 = vmatprep.subr.mxu0 0.0
        %369 = vmatpush1.msra.mxu0 0.0
        %370 = vmatprep.subr.mxu0 0.0
        %371 = vmatpush1.msra.mxu0 0.0
        %372 = vmatprep.mubr.f32.mxu0 0.0
        %373 = vmatmul.mubr.f32.gmra.mrb[0].mxu0 %v228
        %v374 = vpop.f32.mrb[0].mxu0
        %v375 = vadd.f32 0.0, %v374
        %v376 = vpop.f32.mrb[0].mxu0
        %377 = vdwg.mxu0
        %v378 = vadd.f32 %v220, %v304
        %v379 = vadd.f32 %v220, %v306
        %v380 = vadd.f32 %v220, %v375
        %s381 = scalar_lea.vmem [#allocation5], 8
        %v382 = vld [vmem:[%s381] sm:$0xff]
        %383 = vrot.lane.b32.xlu0 %v214, 127
        %v384 = vpop.permute.xlu0 %383
        %385 = vrot.lane.b32.xlu0 %v225, 127
        %v386 = vpop.permute.xlu0 %385
        %387 = vrot.lane.b32.xlu0 %v215, 127
        %v388 = vpop.permute.xlu0 %387
        %vm389 = vcmask 1039360
        %v390 = vsel %vm389, %v384, %v386
        %v391 = vsel %vm389, %v386, %v388
        %v393 = vsel %vm226, %v382, 0
        %v395 = vsel %vm230, %v390, 0
        %v397 = vsel %vm230, %v391, 0
        %v399 = vsel %vm230, %v388, 0
        %401 = vmatprep.subr.mxu0 %v397
        %402 = vmatpush1.msra.mxu0 %v395
        %403 = vmatprep.subr.mxu0 0.0
        %404 = vmatpush1.msra.mxu0 0.0
        %405 = vmatprep.subr.mxu0 0.0
        %406 = vmatpush1.msra.mxu0 0.0
        %407 = vmatprep.subr.mxu0 0.0
        %408 = vmatpush1.msra.mxu0 0.0
        %409 = vmatprep.subr.mxu0 0.0
        %410 = vmatpush1.msra.mxu0 0.0
        %411 = vmatprep.subr.mxu0 0.0
        %412 = vmatpush1.msra.mxu0 0.0
        %413 = vmatprep.subr.mxu0 0.0
        %414 = vmatpush1.msra.mxu0 0.0
        %415 = vmatprep.subr.mxu0 0.0
        %416 = vmatpush1.msra.mxu0 0.0
        %417 = vmatprep.subr.mxu0 0.0
        %418 = vmatpush1.msra.mxu0 0.0
        %419 = vmatprep.subr.mxu0 0.0
        %420 = vmatpush1.msra.mxu0 0.0
        %421 = vmatprep.subr.mxu0 0.0
        %422 = vmatpush1.msra.mxu0 0.0
        %423 = vmatprep.subr.mxu0 0.0
        %424 = vmatpush1.msra.mxu0 0.0
        %425 = vmatprep.subr.mxu0 0.0
        %426 = vmatpush1.msra.mxu0 0.0
        %427 = vmatprep.subr.mxu0 0.0
        %428 = vmatpush1.msra.mxu0 0.0
        %429 = vmatprep.subr.mxu0 0.0
        %430 = vmatpush1.msra.mxu0 0.0
        %431 = vmatprep.subr.mxu0 0.0
        %432 = vmatpush1.msra.mxu0 0.0
        %433 = vmatprep.subr.mxu0 0.0
        %434 = vmatpush1.msra.mxu0 0.0
        %435 = vmatprep.subr.mxu0 0.0
        %436 = vmatpush1.msra.mxu0 0.0
        %437 = vmatprep.subr.mxu0 0.0
        %438 = vmatpush1.msra.mxu0 0.0
        %439 = vmatprep.subr.mxu0 0.0
        %440 = vmatpush1.msra.mxu0 0.0
        %441 = vmatprep.subr.mxu0 0.0
        %442 = vmatpush1.msra.mxu0 0.0
        %443 = vmatprep.subr.mxu0 0.0
        %444 = vmatpush1.msra.mxu0 0.0
        %445 = vmatprep.subr.mxu0 0.0
        %446 = vmatpush1.msra.mxu0 0.0
        %447 = vmatprep.subr.mxu0 0.0
        %448 = vmatpush1.msra.mxu0 0.0
        %449 = vmatprep.subr.mxu0 0.0
        %450 = vmatpush1.msra.mxu0 0.0
        %451 = vmatprep.subr.mxu0 0.0
        %452 = vmatpush1.msra.mxu0 0.0
        %453 = vmatprep.subr.mxu0 0.0
        %454 = vmatpush1.msra.mxu0 0.0
        %455 = vmatprep.subr.mxu0 0.0
        %456 = vmatpush1.msra.mxu0 0.0
        %457 = vmatprep.subr.mxu0 0.0
        %458 = vmatpush1.msra.mxu0 0.0
        %459 = vmatprep.subr.mxu0 0.0
        %460 = vmatpush1.msra.mxu0 0.0
        %461 = vmatprep.subr.mxu0 0.0
        %462 = vmatpush1.msra.mxu0 0.0
        %463 = vmatprep.subr.mxu0 0.0
        %464 = vmatpush1.msra.mxu0 0.0
        %465 = vmatprep.mubr.f32.mxu0 0.0
        %466 = vmatmul.mubr.f32.gmra.mrb[0].mxu0 %v393
        %v467 = vpop.f32.mrb[0].mxu0
        %v468 = vadd.f32 0.0, %v467
        %v469 = vpop.f32.mrb[0].mxu0
        %v470 = vadd.f32 0.0, %v469
        %471 = vdwg.mxu0
        %472 = vmatprep.subr.mxu0 0.0
        %473 = vmatpush1.msra.mxu0 %v399
        %474 = vmatprep.subr.mxu0 0.0
        %475 = vmatpush1.msra.mxu0 0.0
        %476 = vmatprep.subr.mxu0 0.0
        %477 = vmatpush1.msra.mxu0 0.0
        %478 = vmatprep.subr.mxu0 0.0
        %479 = vmatpush1.msra.mxu0 0.0
        %480 = vmatprep.subr.mxu0 0.0
        %481 = vmatpush1.msra.mxu0 0.0
        %482 = vmatprep.subr.mxu0 0.0
        %483 = vmatpush1.msra.mxu0 0.0
        %484 = vmatprep.subr.mxu0 0.0
        %485 = vmatpush1.msra.mxu0 0.0
        %486 = vmatprep.subr.mxu0 0.0
        %487 = vmatpush1.msra.mxu0 0.0
        %488 = vmatprep.subr.mxu0 0.0
        %489 = vmatpush1.msra.mxu0 0.0
        %490 = vmatprep.subr.mxu0 0.0
        %491 = vmatpush1.msra.mxu0 0.0
        %492 = vmatprep.subr.mxu0 0.0
        %493 = vmatpush1.msra.mxu0 0.0
        %494 = vmatprep.subr.mxu0 0.0
        %495 = vmatpush1.msra.mxu0 0.0
        %496 = vmatprep.subr.mxu0 0.0
        %497 = vmatpush1.msra.mxu0 0.0
        %498 = vmatprep.subr.mxu0 0.0
        %499 = vmatpush1.msra.mxu0 0.0
        %500 = vmatprep.subr.mxu0 0.0
        %501 = vmatpush1.msra.mxu0 0.0
        %502 = vmatprep.subr.mxu0 0.0
        %503 = vmatpush1.msra.mxu0 0.0
        %504 = vmatprep.subr.mxu0 0.0
        %505 = vmatpush1.msra.mxu0 0.0
        %506 = vmatprep.subr.mxu0 0.0
        %507 = vmatpush1.msra.mxu0 0.0
        %508 = vmatprep.subr.mxu0 0.0
        %509 = vmatpush1.msra.mxu0 0.0
        %510 = vmatprep.subr.mxu0 0.0
        %511 = vmatpush1.msra.mxu0 0.0
        %512 = vmatprep.subr.mxu0 0.0
        %513 = vmatpush1.msra.mxu0 0.0
        %514 = vmatprep.subr.mxu0 0.0
        %515 = vmatpush1.msra.mxu0 0.0
        %516 = vmatprep.subr.mxu0 0.0
        %517 = vmatpush1.msra.mxu0 0.0
        %518 = vmatprep.subr.mxu0 0.0
        %519 = vmatpush1.msra.mxu0 0.0
        %520 = vmatprep.subr.mxu0 0.0
        %521 = vmatpush1.msra.mxu0 0.0
        %522 = vmatprep.subr.mxu0 0.0
        %523 = vmatpush1.msra.mxu0 0.0
        %524 = vmatprep.subr.mxu0 0.0
        %525 = vmatpush1.msra.mxu0 0.0
        %526 = vmatprep.subr.mxu0 0.0
        %527 = vmatpush1.msra.mxu0 0.0
        %528 = vmatprep.subr.mxu0 0.0
        %529 = vmatpush1.msra.mxu0 0.0
        %530 = vmatprep.subr.mxu0 0.0
        %531 = vmatpush1.msra.mxu0 0.0
        %532 = vmatprep.subr.mxu0 0.0
        %533 = vmatpush1.msra.mxu0 0.0
        %534 = vmatprep.subr.mxu0 0.0
        %535 = vmatpush1.msra.mxu0 0.0
        %536 = vmatprep.mubr.f32.mxu0 0.0
        %537 = vmatmul.mubr.f32.gmra.mrb[0].mxu0 %v393
        %v538 = vpop.f32.mrb[0].mxu0
        %v539 = vadd.f32 0.0, %v538
        %v540 = vpop.f32.mrb[0].mxu0
        %541 = vdwg.mxu0
        %v542 = vadd.f32 %v378, %v468
        %v543 = vadd.f32 %v379, %v470
        %v544 = vadd.f32 %v380, %v539
        %s545 = scalar_lea.vmem [#allocation5], 16
        %v546 = vld [vmem:[%s545] sm:$0xff]
        %547 = vrot.lane.b32.xlu0 %v214, 126
        %v548 = vpop.permute.xlu0 %547
        %549 = vrot.lane.b32.xlu0 %v225, 126
        %v550 = vpop.permute.xlu0 %549
        %551 = vrot.lane.b32.xlu0 %v215, 126
        %v552 = vpop.permute.xlu0 %551
        %vm553 = vcmask 1031168
        %v554 = vsel %vm553, %v548, %v550
        %v555 = vsel %vm553, %v550, %v552
        %v557 = vsel %vm226, %v546, 0
        %v559 = vsel %vm230, %v554, 0
        %v561 = vsel %vm230, %v555, 0
        %v563 = vsel %vm230, %v552, 0
        %565 = vmatprep.subr.mxu0 %v561
        %566 = vmatpush1.msra.mxu0 %v559
        %567 = vmatprep.subr.mxu0 0.0
        %568 = vmatpush1.msra.mxu0 0.0
        %569 = vmatprep.subr.mxu0 0.0
        %570 = vmatpush1.msra.mxu0 0.0
        %571 = vmatprep.subr.mxu0 0.0
        %572 = vmatpush1.msra.mxu0 0.0
        %573 = vmatprep.subr.mxu0 0.0
        %574 = vmatpush1.msra.mxu0 0.0
        %575 = vmatprep.subr.mxu0 0.0
        %576 = vmatpush1.msra.mxu0 0.0
        %577 = vmatprep.subr.mxu0 0.0
        %578 = vmatpush1.msra.mxu0 0.0
        %579 = vmatprep.subr.mxu0 0.0
        %580 = vmatpush1.msra.mxu0 0.0
        %581 = vmatprep.subr.mxu0 0.0
        %582 = vmatpush1.msra.mxu0 0.0
        %583 = vmatprep.subr.mxu0 0.0
        %584 = vmatpush1.msra.mxu0 0.0
        %585 = vmatprep.subr.mxu0 0.0
        %586 = vmatpush1.msra.mxu0 0.0
        %587 = vmatprep.subr.mxu0 0.0
        %588 = vmatpush1.msra.mxu0 0.0
        %589 = vmatprep.subr.mxu0 0.0
        %590 = vmatpush1.msra.mxu0 0.0
        %591 = vmatprep.subr.mxu0 0.0
        %592 = vmatpush1.msra.mxu0 0.0
        %593 = vmatprep.subr.mxu0 0.0
        %594 = vmatpush1.msra.mxu0 0.0
        %595 = vmatprep.subr.mxu0 0.0
        %596 = vmatpush1.msra.mxu0 0.0
        %597 = vmatprep.subr.mxu0 0.0
        %598 = vmatpush1.msra.mxu0 0.0
        %599 = vmatprep.subr.mxu0 0.0
        %600 = vmatpush1.msra.mxu0 0.0
        %601 = vmatprep.subr.mxu0 0.0
        %602 = vmatpush1.msra.mxu0 0.0
        %603 = vmatprep.subr.mxu0 0.0
        %604 = vmatpush1.msra.mxu0 0.0
        %605 = vmatprep.subr.mxu0 0.0
        %606 = vmatpush1.msra.mxu0 0.0
        %607 = vmatprep.subr.mxu0 0.0
        %608 = vmatpush1.msra.mxu0 0.0
        %609 = vmatprep.subr.mxu0 0.0
        %610 = vmatpush1.msra.mxu0 0.0
        %611 = vmatprep.subr.mxu0 0.0
        %612 = vmatpush1.msra.mxu0 0.0
        %613 = vmatprep.subr.mxu0 0.0
        %614 = vmatpush1.msra.mxu0 0.0
        %615 = vmatprep.subr.mxu0 0.0
        %616 = vmatpush1.msra.mxu0 0.0
        %617 = vmatprep.subr.mxu0 0.0
        %618 = vmatpush1.msra.mxu0 0.0
        %619 = vmatprep.subr.mxu0 0.0
        %620 = vmatpush1.msra.mxu0 0.0
        %621 = vmatprep.subr.mxu0 0.0
        %622 = vmatpush1.msra.mxu0 0.0
        %623 = vmatprep.subr.mxu0 0.0
        %624 = vmatpush1.msra.mxu0 0.0
        %625 = vmatprep.subr.mxu0 0.0
        %626 = vmatpush1.msra.mxu0 0.0
        %627 = vmatprep.subr.mxu0 0.0
        %628 = vmatpush1.msra.mxu0 0.0
        %629 = vmatprep.mubr.f32.mxu0 0.0
        %630 = vmatmul.mubr.f32.gmra.mrb[0].mxu0 %v557
        %v631 = vpop.f32.mrb[0].mxu0
        %v632 = vadd.f32 0.0, %v631
        %v633 = vpop.f32.mrb[0].mxu0
        %v634 = vadd.f32 0.0, %v633
        %635 = vdwg.mxu0
        %636 = vmatprep.subr.mxu0 0.0
        %637 = vmatpush1.msra.mxu0 %v563
        %638 = vmatprep.subr.mxu0 0.0
        %639 = vmatpush1.msra.mxu0 0.0
        %640 = vmatprep.subr.mxu0 0.0
        %641 = vmatpush1.msra.mxu0 0.0
        %642 = vmatprep.subr.mxu0 0.0
        %643 = vmatpush1.msra.mxu0 0.0
        %644 = vmatprep.subr.mxu0 0.0
        %645 = vmatpush1.msra.mxu0 0.0
        %646 = vmatprep.subr.mxu0 0.0
        %647 = vmatpush1.msra.mxu0 0.0
        %648 = vmatprep.subr.mxu0 0.0
        %649 = vmatpush1.msra.mxu0 0.0
        %650 = vmatprep.subr.mxu0 0.0
        %651 = vmatpush1.msra.mxu0 0.0
        %652 = vmatprep.subr.mxu0 0.0
        %653 = vmatpush1.msra.mxu0 0.0
        %654 = vmatprep.subr.mxu0 0.0
        %655 = vmatpush1.msra.mxu0 0.0
        %656 = vmatprep.subr.mxu0 0.0
        %657 = vmatpush1.msra.mxu0 0.0
        %658 = vmatprep.subr.mxu0 0.0
        %659 = vmatpush1.msra.mxu0 0.0
        %660 = vmatprep.subr.mxu0 0.0
        %661 = vmatpush1.msra.mxu0 0.0
        %662 = vmatprep.subr.mxu0 0.0
        %663 = vmatpush1.msra.mxu0 0.0
        %664 = vmatprep.subr.mxu0 0.0
        %665 = vmatpush1.msra.mxu0 0.0
        %666 = vmatprep.subr.mxu0 0.0
        %667 = vmatpush1.msra.mxu0 0.0
        %668 = vmatprep.subr.mxu0 0.0
        %669 = vmatpush1.msra.mxu0 0.0
        %670 = vmatprep.subr.mxu0 0.0
        %671 = vmatpush1.msra.mxu0 0.0
        %672 = vmatprep.subr.mxu0 0.0
        %673 = vmatpush1.msra.mxu0 0.0
        %674 = vmatprep.subr.mxu0 0.0
        %675 = vmatpush1.msra.mxu0 0.0
        %676 = vmatprep.subr.mxu0 0.0
        %677 = vmatpush1.msra.mxu0 0.0
        %678 = vmatprep.subr.mxu0 0.0
        %679 = vmatpush1.msra.mxu0 0.0
        %680 = vmatprep.subr.mxu0 0.0
        %681 = vmatpush1.msra.mxu0 0.0
        %682 = vmatprep.subr.mxu0 0.0
        %683 = vmatpush1.msra.mxu0 0.0
        %684 = vmatprep.subr.mxu0 0.0
        %685 = vmatpush1.msra.mxu0 0.0
        %686 = vmatprep.subr.mxu0 0.0
        %687 = vmatpush1.msra.mxu0 0.0
        %688 = vmatprep.subr.mxu0 0.0
        %689 = vmatpush1.msra.mxu0 0.0
        %690 = vmatprep.subr.mxu0 0.0
        %691 = vmatpush1.msra.mxu0 0.0
        %692 = vmatprep.subr.mxu0 0.0
        %693 = vmatpush1.msra.mxu0 0.0
        %694 = vmatprep.subr.mxu0 0.0
        %695 = vmatpush1.msra.mxu0 0.0
        %696 = vmatprep.subr.mxu0 0.0
        %697 = vmatpush1.msra.mxu0 0.0
        %698 = vmatprep.subr.mxu0 0.0
        %699 = vmatpush1.msra.mxu0 0.0
        %700 = vmatprep.mubr.f32.mxu0 0.0
        %701 = vmatmul.mubr.f32.gmra.mrb[0].mxu0 %v557
        %v702 = vpop.f32.mrb[0].mxu0
        %v703 = vadd.f32 0.0, %v702
        %v704 = vpop.f32.mrb[0].mxu0
        %705 = vdwg.mxu0
        %v706 = vadd.f32 %v542, %v632
        %v707 = vadd.f32 %v543, %v634
        %v708 = vadd.f32 %v544, %v703
        %s709 = scalar_lea.vmem [#allocation5], 24
        %v710 = vld [vmem:[%s709] sm:$0xff]
        %711 = vrot.lane.b32.xlu0 %v214, 110
        %v712 = vpop.permute.xlu0 %711
        %713 = vrot.lane.b32.xlu0 %v225, 110
        %v714 = vpop.permute.xlu0 %713
        %715 = vrot.lane.b32.xlu0 %v215, 110
        %v716 = vpop.permute.xlu0 %715
        %vm717 = vcmask 900096
        %v718 = vsel %vm717, %v712, %v714
        %v719 = vsel %vm717, %v714, %v716
        %v721 = vsel %vm226, %v710, 0
        %v723 = vsel %vm230, %v718, 0
        %v725 = vsel %vm230, %v719, 0
        %v727 = vsel %vm230, %v716, 0
        %729 = vmatprep.subr.mxu0 %v725
        %730 = vmatpush1.msra.mxu0 %v723
        %731 = vmatprep.subr.mxu0 0.0
        %732 = vmatpush1.msra.mxu0 0.0
        %733 = vmatprep.subr.mxu0 0.0
        %734 = vmatpush1.msra.mxu0 0.0
        %735 = vmatprep.subr.mxu0 0.0
        %736 = vmatpush1.msra.mxu0 0.0
        %737 = vmatprep.subr.mxu0 0.0
        %738 = vmatpush1.msra.mxu0 0.0
        %739 = vmatprep.subr.mxu0 0.0
        %740 = vmatpush1.msra.mxu0 0.0
        %741 = vmatprep.subr.mxu0 0.0
        %742 = vmatpush1.msra.mxu0 0.0
        %743 = vmatprep.subr.mxu0 0.0
        %744 = vmatpush1.msra.mxu0 0.0
        %745 = vmatprep.subr.mxu0 0.0
        %746 = vmatpush1.msra.mxu0 0.0
        %747 = vmatprep.subr.mxu0 0.0
        %748 = vmatpush1.msra.mxu0 0.0
        %749 = vmatprep.subr.mxu0 0.0
        %750 = vmatpush1.msra.mxu0 0.0
        %751 = vmatprep.subr.mxu0 0.0
        %752 = vmatpush1.msra.mxu0 0.0
        %753 = vmatprep.subr.mxu0 0.0
        %754 = vmatpush1.msra.mxu0 0.0
        %755 = vmatprep.subr.mxu0 0.0
        %756 = vmatpush1.msra.mxu0 0.0
        %757 = vmatprep.subr.mxu0 0.0
        %758 = vmatpush1.msra.mxu0 0.0
        %759 = vmatprep.subr.mxu0 0.0
        %760 = vmatpush1.msra.mxu0 0.0
        %761 = vmatprep.subr.mxu0 0.0
        %762 = vmatpush1.msra.mxu0 0.0
        %763 = vmatprep.subr.mxu0 0.0
        %764 = vmatpush1.msra.mxu0 0.0
        %765 = vmatprep.subr.mxu0 0.0
        %766 = vmatpush1.msra.mxu0 0.0
        %767 = vmatprep.subr.mxu0 0.0
        %768 = vmatpush1.msra.mxu0 0.0
        %769 = vmatprep.subr.mxu0 0.0
        %770 = vmatpush1.msra.mxu0 0.0
        %771 = vmatprep.subr.mxu0 0.0
        %772 = vmatpush1.msra.mxu0 0.0
        %773 = vmatprep.subr.mxu0 0.0
        %774 = vmatpush1.msra.mxu0 0.0
        %775 = vmatprep.subr.mxu0 0.0
        %776 = vmatpush1.msra.mxu0 0.0
        %777 = vmatprep.subr.mxu0 0.0
        %778 = vmatpush1.msra.mxu0 0.0
        %779 = vmatprep.subr.mxu0 0.0
        %780 = vmatpush1.msra.mxu0 0.0
        %781 = vmatprep.subr.mxu0 0.0
        %782 = vmatpush1.msra.mxu0 0.0
        %783 = vmatprep.subr.mxu0 0.0
        %784 = vmatpush1.msra.mxu0 0.0
        %785 = vmatprep.subr.mxu0 0.0
        %786 = vmatpush1.msra.mxu0 0.0
        %787 = vmatprep.subr.mxu0 0.0
        %788 = vmatpush1.msra.mxu0 0.0
        %789 = vmatprep.subr.mxu0 0.0
        %790 = vmatpush1.msra.mxu0 0.0
        %791 = vmatprep.subr.mxu0 0.0
        %792 = vmatpush1.msra.mxu0 0.0
        %793 = vmatprep.mubr.f32.mxu0 0.0
        %794 = vmatmul.mubr.f32.gmra.mrb[0].mxu0 %v721
        %v795 = vpop.f32.mrb[0].mxu0
        %v796 = vadd.f32 0.0, %v795
        %v797 = vpop.f32.mrb[0].mxu0
        %v798 = vadd.f32 0.0, %v797
        %799 = vdwg.mxu0
        %800 = vmatprep.subr.mxu0 0.0
        %801 = vmatpush1.msra.mxu0 %v727
        %802 = vmatprep.subr.mxu0 0.0
        %803 = vmatpush1.msra.mxu0 0.0
        %804 = vmatprep.subr.mxu0 0.0
        %805 = vmatpush1.msra.mxu0 0.0
        %806 = vmatprep.subr.mxu0 0.0
        %807 = vmatpush1.msra.mxu0 0.0
        %808 = vmatprep.subr.mxu0 0.0
        %809 = vmatpush1.msra.mxu0 0.0
        %810 = vmatprep.subr.mxu0 0.0
        %811 = vmatpush1.msra.mxu0 0.0
        %812 = vmatprep.subr.mxu0 0.0
        %813 = vmatpush1.msra.mxu0 0.0
        %814 = vmatprep.subr.mxu0 0.0
        %815 = vmatpush1.msra.mxu0 0.0
        %816 = vmatprep.subr.mxu0 0.0
        %817 = vmatpush1.msra.mxu0 0.0
        %818 = vmatprep.subr.mxu0 0.0
        %819 = vmatpush1.msra.mxu0 0.0
        %820 = vmatprep.subr.mxu0 0.0
        %821 = vmatpush1.msra.mxu0 0.0
        %822 = vmatprep.subr.mxu0 0.0
        %823 = vmatpush1.msra.mxu0 0.0
        %824 = vmatprep.subr.mxu0 0.0
        %825 = vmatpush1.msra.mxu0 0.0
        %826 = vmatprep.subr.mxu0 0.0
        %827 = vmatpush1.msra.mxu0 0.0
        %828 = vmatprep.subr.mxu0 0.0
        %829 = vmatpush1.msra.mxu0 0.0
        %830 = vmatprep.subr.mxu0 0.0
        %831 = vmatpush1.msra.mxu0 0.0
        %832 = vmatprep.subr.mxu0 0.0
        %833 = vmatpush1.msra.mxu0 0.0
        %834 = vmatprep.subr.mxu0 0.0
        %835 = vmatpush1.msra.mxu0 0.0
        %836 = vmatprep.subr.mxu0 0.0
        %837 = vmatpush1.msra.mxu0 0.0
        %838 = vmatprep.subr.mxu0 0.0
        %839 = vmatpush1.msra.mxu0 0.0
        %840 = vmatprep.subr.mxu0 0.0
        %841 = vmatpush1.msra.mxu0 0.0
        %842 = vmatprep.subr.mxu0 0.0
        %843 = vmatpush1.msra.mxu0 0.0
        %844 = vmatprep.subr.mxu0 0.0
        %845 = vmatpush1.msra.mxu0 0.0
        %846 = vmatprep.subr.mxu0 0.0
        %847 = vmatpush1.msra.mxu0 0.0
        %848 = vmatprep.subr.mxu0 0.0
        %849 = vmatpush1.msra.mxu0 0.0
        %850 = vmatprep.subr.mxu0 0.0
        %851 = vmatpush1.msra.mxu0 0.0
        %852 = vmatprep.subr.mxu0 0.0
        %853 = vmatpush1.msra.mxu0 0.0
        %854 = vmatprep.subr.mxu0 0.0
        %855 = vmatpush1.msra.mxu0 0.0
        %856 = vmatprep.subr.mxu0 0.0
        %857 = vmatpush1.msra.mxu0 0.0
        %858 = vmatprep.subr.mxu0 0.0
        %859 = vmatpush1.msra.mxu0 0.0
        %860 = vmatprep.subr.mxu0 0.0
        %861 = vmatpush1.msra.mxu0 0.0
        %862 = vmatprep.subr.mxu0 0.0
        %863 = vmatpush1.msra.mxu0 0.0
        %864 = vmatprep.mubr.f32.mxu0 0.0
        %865 = vmatmul.mubr.f32.gmra.mrb[0].mxu0 %v721
        %v866 = vpop.f32.mrb[0].mxu0
        %v867 = vadd.f32 0.0, %v866
        %v868 = vpop.f32.mrb[0].mxu0
        %869 = vdwg.mxu0
        %v870 = vadd.f32 %v706, %v796
        %v871 = vadd.f32 %v707, %v798
        %v872 = vadd.f32 %v708, %v867
        %s873 = scalar_lea.vmem [#allocation5], 32
        %v874 = vld [vmem:[%s873] sm:$0xff]
        %875 = vrot.lane.b32.xlu0 %v214, 109
        %v876 = vpop.permute.xlu0 %875
        %877 = vrot.lane.b32.xlu0 %v225, 109
        %v878 = vpop.permute.xlu0 %877
        %879 = vrot.lane.b32.xlu0 %v215, 109
        %v880 = vpop.permute.xlu0 %879
        %vm881 = vcmask 891904
        %v882 = vsel %vm881, %v876, %v878
        %v883 = vsel %vm881, %v878, %v880
        %v885 = vsel %vm226, %v874, 0
        %v887 = vsel %vm230, %v882, 0
        %v889 = vsel %vm230, %v883, 0
        %v891 = vsel %vm230, %v880, 0
        %893 = vmatprep.subr.mxu0 %v889
        %894 = vmatpush1.msra.mxu0 %v887
        %895 = vmatprep.subr.mxu0 0.0
        %896 = vmatpush1.msra.mxu0 0.0
        %897 = vmatprep.subr.mxu0 0.0
        %898 = vmatpush1.msra.mxu0 0.0
        %899 = vmatprep.subr.mxu0 0.0
        %900 = vmatpush1.msra.mxu0 0.0
        %901 = vmatprep.subr.mxu0 0.0
        %902 = vmatpush1.msra.mxu0 0.0
        %903 = vmatprep.subr.mxu0 0.0
        %904 = vmatpush1.msra.mxu0 0.0
        %905 = vmatprep.subr.mxu0 0.0
        %906 = vmatpush1.msra.mxu0 0.0
        %907 = vmatprep.subr.mxu0 0.0
        %908 = vmatpush1.msra.mxu0 0.0
        %909 = vmatprep.subr.mxu0 0.0
        %910 = vmatpush1.msra.mxu0 0.0
        %911 = vmatprep.subr.mxu0 0.0
        %912 = vmatpush1.msra.mxu0 0.0
        %913 = vmatprep.subr.mxu0 0.0
        %914 = vmatpush1.msra.mxu0 0.0
        %915 = vmatprep.subr.mxu0 0.0
        %916 = vmatpush1.msra.mxu0 0.0
        %917 = vmatprep.subr.mxu0 0.0
        %918 = vmatpush1.msra.mxu0 0.0
        %919 = vmatprep.subr.mxu0 0.0
        %920 = vmatpush1.msra.mxu0 0.0
        %921 = vmatprep.subr.mxu0 0.0
        %922 = vmatpush1.msra.mxu0 0.0
        %923 = vmatprep.subr.mxu0 0.0
        %924 = vmatpush1.msra.mxu0 0.0
        %925 = vmatprep.subr.mxu0 0.0
        %926 = vmatpush1.msra.mxu0 0.0
        %927 = vmatprep.subr.mxu0 0.0
        %928 = vmatpush1.msra.mxu0 0.0
        %929 = vmatprep.subr.mxu0 0.0
        %930 = vmatpush1.msra.mxu0 0.0
        %931 = vmatprep.subr.mxu0 0.0
        %932 = vmatpush1.msra.mxu0 0.0
        %933 = vmatprep.subr.mxu0 0.0
        %934 = vmatpush1.msra.mxu0 0.0
        %935 = vmatprep.subr.mxu0 0.0
        %936 = vmatpush1.msra.mxu0 0.0
        %937 = vmatprep.subr.mxu0 0.0
        %938 = vmatpush1.msra.mxu0 0.0
        %939 = vmatprep.subr.mxu0 0.0
        %940 = vmatpush1.msra.mxu0 0.0
        %941 = vmatprep.subr.mxu0 0.0
        %942 = vmatpush1.msra.mxu0 0.0
        %943 = vmatprep.subr.mxu0 0.0
        %944 = vmatpush1.msra.mxu0 0.0
        %945 = vmatprep.subr.mxu0 0.0
        %946 = vmatpush1.msra.mxu0 0.0
        %947 = vmatprep.subr.mxu0 0.0
        %948 = vmatpush1.msra.mxu0 0.0
        %949 = vmatprep.subr.mxu0 0.0
        %950 = vmatpush1.msra.mxu0 0.0
        %951 = vmatprep.subr.mxu0 0.0
        %952 = vmatpush1.msra.mxu0 0.0
        %953 = vmatprep.subr.mxu0 0.0
        %954 = vmatpush1.msra.mxu0 0.0
        %955 = vmatprep.subr.mxu0 0.0
        %956 = vmatpush1.msra.mxu0 0.0
        %957 = vmatprep.mubr.f32.mxu0 0.0
        %958 = vmatmul.mubr.f32.gmra.mrb[0].mxu0 %v885
        %v959 = vpop.f32.mrb[0].mxu0
        %v960 = vadd.f32 0.0, %v959
        %v961 = vpop.f32.mrb[0].mxu0
        %v962 = vadd.f32 0.0, %v961
        %963 = vdwg.mxu0
        %964 = vmatprep.subr.mxu0 0.0
        %965 = vmatpush1.msra.mxu0 %v891
        %966 = vmatprep.subr.mxu0 0.0
        %967 = vmatpush1.msra.mxu0 0.0
        %968 = vmatprep.subr.mxu0 0.0
        %969 = vmatpush1.msra.mxu0 0.0
        %970 = vmatprep.subr.mxu0 0.0
        %971 = vmatpush1.msra.mxu0 0.0
        %972 = vmatprep.subr.mxu0 0.0
        %973 = vmatpush1.msra.mxu0 0.0
        %974 = vmatprep.subr.mxu0 0.0
        %975 = vmatpush1.msra.mxu0 0.0
        %976 = vmatprep.subr.mxu0 0.0
        %977 = vmatpush1.msra.mxu0 0.0
        %978 = vmatprep.subr.mxu0 0.0
        %979 = vmatpush1.msra.mxu0 0.0
        %980 = vmatprep.subr.mxu0 0.0
        %981 = vmatpush1.msra.mxu0 0.0
        %982 = vmatprep.subr.mxu0 0.0
        %983 = vmatpush1.msra.mxu0 0.0
        %984 = vmatprep.subr.mxu0 0.0
        %985 = vmatpush1.msra.mxu0 0.0
        %986 = vmatprep.subr.mxu0 0.0
        %987 = vmatpush1.msra.mxu0 0.0
        %988 = vmatprep.subr.mxu0 0.0
        %989 = vmatpush1.msra.mxu0 0.0
        %990 = vmatprep.subr.mxu0 0.0
        %991 = vmatpush1.msra.mxu0 0.0
        %992 = vmatprep.subr.mxu0 0.0
        %993 = vmatpush1.msra.mxu0 0.0
        %994 = vmatprep.subr.mxu0 0.0
        %995 = vmatpush1.msra.mxu0 0.0
        %996 = vmatprep.subr.mxu0 0.0
        %997 = vmatpush1.msra.mxu0 0.0
        %998 = vmatprep.subr.mxu0 0.0
        %999 = vmatpush1.msra.mxu0 0.0
        %1000 = vmatprep.subr.mxu0 0.0
        %1001 = vmatpush1.msra.mxu0 0.0
        %1002 = vmatprep.subr.mxu0 0.0
        %1003 = vmatpush1.msra.mxu0 0.0
        %1004 = vmatprep.subr.mxu0 0.0
        %1005 = vmatpush1.msra.mxu0 0.0
        %1006 = vmatprep.subr.mxu0 0.0
        %1007 = vmatpush1.msra.mxu0 0.0
        %1008 = vmatprep.subr.mxu0 0.0
        %1009 = vmatpush1.msra.mxu0 0.0
        %1010 = vmatprep.subr.mxu0 0.0
        %1011 = vmatpush1.msra.mxu0 0.0
        %1012 = vmatprep.subr.mxu0 0.0
        %1013 = vmatpush1.msra.mxu0 0.0
        %1014 = vmatprep.subr.mxu0 0.0
        %1015 = vmatpush1.msra.mxu0 0.0
        %1016 = vmatprep.subr.mxu0 0.0
        %1017 = vmatpush1.msra.mxu0 0.0
        %1018 = vmatprep.subr.mxu0 0.0
        %1019 = vmatpush1.msra.mxu0 0.0
        %1020 = vmatprep.subr.mxu0 0.0
        %1021 = vmatpush1.msra.mxu0 0.0
        %1022 = vmatprep.subr.mxu0 0.0
        %1023 = vmatpush1.msra.mxu0 0.0
        %1024 = vmatprep.subr.mxu0 0.0
        %1025 = vmatpush1.msra.mxu0 0.0
        %1026 = vmatprep.subr.mxu0 0.0
        %1027 = vmatpush1.msra.mxu0 0.0
        %1028 = vmatprep.mubr.f32.mxu0 0.0
        %1029 = vmatmul.mubr.f32.gmra.mrb[0].mxu0 %v885
        %v1030 = vpop.f32.mrb[0].mxu0
        %v1031 = vadd.f32 0.0, %v1030
        %v1032 = vpop.f32.mrb[0].mxu0
        %1033 = vdwg.mxu0
        %v1034 = vadd.f32 %v870, %v960
        %v1035 = vadd.f32 %v871, %v962
        %v1036 = vadd.f32 %v872, %v1031
        %s1037 = scalar_lea.vmem [#allocation5], 40
        %v1038 = vld [vmem:[%s1037] sm:$0xff]
        %1039 = vrot.lane.b32.xlu0 %v214, 108
        %v1040 = vpop.permute.xlu0 %1039
        %1041 = vrot.lane.b32.xlu0 %v225, 108
        %v1042 = vpop.permute.xlu0 %1041
        %1043 = vrot.lane.b32.xlu0 %v215, 108
        %v1044 = vpop.permute.xlu0 %1043
        %vm1045 = vcmask 883712
        %v1046 = vsel %vm1045, %v1040, %v1042
        %v1047 = vsel %vm1045, %v1042, %v1044
        %v1049 = vsel %vm226, %v1038, 0
        %v1051 = vsel %vm230, %v1046, 0
        %v1053 = vsel %vm230, %v1047, 0
        %v1055 = vsel %vm230, %v1044, 0
        %1057 = vmatprep.subr.mxu0 %v1053
        %1058 = vmatpush1.msra.mxu0 %v1051
        %1059 = vmatprep.subr.mxu0 0.0
        %1060 = vmatpush1.msra.mxu0 0.0
        %1061 = vmatprep.subr.mxu0 0.0
        %1062 = vmatpush1.msra.mxu0 0.0
        %1063 = vmatprep.subr.mxu0 0.0
        %1064 = vmatpush1.msra.mxu0 0.0
        %1065 = vmatprep.subr.mxu0 0.0
        %1066 = vmatpush1.msra.mxu0 0.0
        %1067 = vmatprep.subr.mxu0 0.0
        %1068 = vmatpush1.msra.mxu0 0.0
        %1069 = vmatprep.subr.mxu0 0.0
        %1070 = vmatpush1.msra.mxu0 0.0
        %1071 = vmatprep.subr.mxu0 0.0
        %1072 = vmatpush1.msra.mxu0 0.0
        %1073 = vmatprep.subr.mxu0 0.0
        %1074 = vmatpush1.msra.mxu0 0.0
        %1075 = vmatprep.subr.mxu0 0.0
        %1076 = vmatpush1.msra.mxu0 0.0
        %1077 = vmatprep.subr.mxu0 0.0
        %1078 = vmatpush1.msra.mxu0 0.0
        %1079 = vmatprep.subr.mxu0 0.0
        %1080 = vmatpush1.msra.mxu0 0.0
        %1081 = vmatprep.subr.mxu0 0.0
        %1082 = vmatpush1.msra.mxu0 0.0
        %1083 = vmatprep.subr.mxu0 0.0
        %1084 = vmatpush1.msra.mxu0 0.0
        %1085 = vmatprep.subr.mxu0 0.0
        %1086 = vmatpush1.msra.mxu0 0.0
        %1087 = vmatprep.subr.mxu0 0.0
        %1088 = vmatpush1.msra.mxu0 0.0
        %1089 = vmatprep.subr.mxu0 0.0
        %1090 = vmatpush1.msra.mxu0 0.0
        %1091 = vmatprep.subr.mxu0 0.0
        %1092 = vmatpush1.msra.mxu0 0.0
        %1093 = vmatprep.subr.mxu0 0.0
        %1094 = vmatpush1.msra.mxu0 0.0
        %1095 = vmatprep.subr.mxu0 0.0
        %1096 = vmatpush1.msra.mxu0 0.0
        %1097 = vmatprep.subr.mxu0 0.0
        %1098 = vmatpush1.msra.mxu0 0.0
        %1099 = vmatprep.subr.mxu0 0.0
        %1100 = vmatpush1.msra.mxu0 0.0
        %1101 = vmatprep.subr.mxu0 0.0
        %1102 = vmatpush1.msra.mxu0 0.0
        %1103 = vmatprep.subr.mxu0 0.0
        %1104 = vmatpush1.msra.mxu0 0.0
        %1105 = vmatprep.subr.mxu0 0.0
        %1106 = vmatpush1.msra.mxu0 0.0
        %1107 = vmatprep.subr.mxu0 0.0
        %1108 = vmatpush1.msra.mxu0 0.0
        %1109 = vmatprep.subr.mxu0 0.0
        %1110 = vmatpush1.msra.mxu0 0.0
        %1111 = vmatprep.subr.mxu0 0.0
        %1112 = vmatpush1.msra.mxu0 0.0
        %1113 = vmatprep.subr.mxu0 0.0
        %1114 = vmatpush1.msra.mxu0 0.0
        %1115 = vmatprep.subr.mxu0 0.0
        %1116 = vmatpush1.msra.mxu0 0.0
        %1117 = vmatprep.subr.mxu0 0.0
        %1118 = vmatpush1.msra.mxu0 0.0
        %1119 = vmatprep.subr.mxu0 0.0
        %1120 = vmatpush1.msra.mxu0 0.0
        %1121 = vmatprep.mubr.f32.mxu0 0.0
        %1122 = vmatmul.mubr.f32.gmra.mrb[0].mxu0 %v1049
        %v1123 = vpop.f32.mrb[0].mxu0
        %v1124 = vadd.f32 0.0, %v1123
        %v1125 = vpop.f32.mrb[0].mxu0
        %v1126 = vadd.f32 0.0, %v1125
        %1127 = vdwg.mxu0
        %1128 = vmatprep.subr.mxu0 0.0
        %1129 = vmatpush1.msra.mxu0 %v1055
        %1130 = vmatprep.subr.mxu0 0.0
        %1131 = vmatpush1.msra.mxu0 0.0
        %1132 = vmatprep.subr.mxu0 0.0
        %1133 = vmatpush1.msra.mxu0 0.0
        %1134 = vmatprep.subr.mxu0 0.0
        %1135 = vmatpush1.msra.mxu0 0.0
        %1136 = vmatprep.subr.mxu0 0.0
        %1137 = vmatpush1.msra.mxu0 0.0
        %1138 = vmatprep.subr.mxu0 0.0
        %1139 = vmatpush1.msra.mxu0 0.0
        %1140 = vmatprep.subr.mxu0 0.0
        %1141 = vmatpush1.msra.mxu0 0.0
        %1142 = vmatprep.subr.mxu0 0.0
        %1143 = vmatpush1.msra.mxu0 0.0
        %1144 = vmatprep.subr.mxu0 0.0
        %1145 = vmatpush1.msra.mxu0 0.0
        %1146 = vmatprep.subr.mxu0 0.0
        %1147 = vmatpush1.msra.mxu0 0.0
        %1148 = vmatprep.subr.mxu0 0.0
        %1149 = vmatpush1.msra.mxu0 0.0
        %1150 = vmatprep.subr.mxu0 0.0
        %1151 = vmatpush1.msra.mxu0 0.0
        %1152 = vmatprep.subr.mxu0 0.0
        %1153 = vmatpush1.msra.mxu0 0.0
        %1154 = vmatprep.subr.mxu0 0.0
        %1155 = vmatpush1.msra.mxu0 0.0
        %1156 = vmatprep.subr.mxu0 0.0
        %1157 = vmatpush1.msra.mxu0 0.0
        %1158 = vmatprep.subr.mxu0 0.0
        %1159 = vmatpush1.msra.mxu0 0.0
        %1160 = vmatprep.subr.mxu0 0.0
        %1161 = vmatpush1.msra.mxu0 0.0
        %1162 = vmatprep.subr.mxu0 0.0
        %1163 = vmatpush1.msra.mxu0 0.0
        %1164 = vmatprep.subr.mxu0 0.0
        %1165 = vmatpush1.msra.mxu0 0.0
        %1166 = vmatprep.subr.mxu0 0.0
        %1167 = vmatpush1.msra.mxu0 0.0
        %1168 = vmatprep.subr.mxu0 0.0
        %1169 = vmatpush1.msra.mxu0 0.0
        %1170 = vmatprep.subr.mxu0 0.0
        %1171 = vmatpush1.msra.mxu0 0.0
        %1172 = vmatprep.subr.mxu0 0.0
        %1173 = vmatpush1.msra.mxu0 0.0
        %1174 = vmatprep.subr.mxu0 0.0
        %1175 = vmatpush1.msra.mxu0 0.0
        %1176 = vmatprep.subr.mxu0 0.0
        %1177 = vmatpush1.msra.mxu0 0.0
        %1178 = vmatprep.subr.mxu0 0.0
        %1179 = vmatpush1.msra.mxu0 0.0
        %1180 = vmatprep.subr.mxu0 0.0
        %1181 = vmatpush1.msra.mxu0 0.0
        %1182 = vmatprep.subr.mxu0 0.0
        %1183 = vmatpush1.msra.mxu0 0.0
        %1184 = vmatprep.subr.mxu0 0.0
        %1185 = vmatpush1.msra.mxu0 0.0
        %1186 = vmatprep.subr.mxu0 0.0
        %1187 = vmatpush1.msra.mxu0 0.0
        %1188 = vmatprep.subr.mxu0 0.0
        %1189 = vmatpush1.msra.mxu0 0.0
        %1190 = vmatprep.subr.mxu0 0.0
        %1191 = vmatpush1.msra.mxu0 0.0
        %1192 = vmatprep.mubr.f32.mxu0 0.0
        %1193 = vmatmul.mubr.f32.gmra.mrb[0].mxu0 %v1049
        %v1194 = vpop.f32.mrb[0].mxu0
        %v1195 = vadd.f32 0.0, %v1194
        %v1196 = vpop.f32.mrb[0].mxu0
        %1197 = vdwg.mxu0
        %v1198 = vadd.f32 %v1034, %v1124
        %v1199 = vadd.f32 %v1035, %v1126
        %v1200 = vadd.f32 %v1036, %v1195
        %s1201 = scalar_lea.vmem [#allocation5], 48
        %v1202 = vld [vmem:[%s1201] sm:$0xff]
        %1203 = vrot.lane.b32.xlu0 %v214, 92
        %v1204 = vpop.permute.xlu0 %1203
        %1205 = vrot.lane.b32.xlu0 %v225, 92
        %v1206 = vpop.permute.xlu0 %1205
        %1207 = vrot.lane.b32.xlu0 %v215, 92
        %v1208 = vpop.permute.xlu0 %1207
        %vm1209 = vcmask 752640
        %v1210 = vsel %vm1209, %v1204, %v1206
        %v1211 = vsel %vm1209, %v1206, %v1208
        %v1213 = vsel %vm226, %v1202, 0
        %v1215 = vsel %vm230, %v1210, 0
        %v1217 = vsel %vm230, %v1211, 0
        %v1219 = vsel %vm230, %v1208, 0
        %1221 = vmatprep.subr.mxu0 %v1217
        %1222 = vmatpush1.msra.mxu0 %v1215
        %1223 = vmatprep.subr.mxu0 0.0
        %1224 = vmatpush1.msra.mxu0 0.0
        %1225 = vmatprep.subr.mxu0 0.0
        %1226 = vmatpush1.msra.mxu0 0.0
        %1227 = vmatprep.subr.mxu0 0.0
        %1228 = vmatpush1.msra.mxu0 0.0
        %1229 = vmatprep.subr.mxu0 0.0
        %1230 = vmatpush1.msra.mxu0 0.0
        %1231 = vmatprep.subr.mxu0 0.0
        %1232 = vmatpush1.msra.mxu0 0.0
        %1233 = vmatprep.subr.mxu0 0.0
        %1234 = vmatpush1.msra.mxu0 0.0
        %1235 = vmatprep.subr.mxu0 0.0
        %1236 = vmatpush1.msra.mxu0 0.0
        %1237 = vmatprep.subr.mxu0 0.0
        %1238 = vmatpush1.msra.mxu0 0.0
        %1239 = vmatprep.subr.mxu0 0.0
        %1240 = vmatpush1.msra.mxu0 0.0
        %1241 = vmatprep.subr.mxu0 0.0
        %1242 = vmatpush1.msra.mxu0 0.0
        %1243 = vmatprep.subr.mxu0 0.0
        %1244 = vmatpush1.msra.mxu0 0.0
        %1245 = vmatprep.subr.mxu0 0.0
        %1246 = vmatpush1.msra.mxu0 0.0
        %1247 = vmatprep.subr.mxu0 0.0
        %1248 = vmatpush1.msra.mxu0 0.0
        %1249 = vmatprep.subr.mxu0 0.0
        %1250 = vmatpush1.msra.mxu0 0.0
        %1251 = vmatprep.subr.mxu0 0.0
        %1252 = vmatpush1.msra.mxu0 0.0
        %1253 = vmatprep.subr.mxu0 0.0
        %1254 = vmatpush1.msra.mxu0 0.0
        %1255 = vmatprep.subr.mxu0 0.0
        %1256 = vmatpush1.msra.mxu0 0.0
        %1257 = vmatprep.subr.mxu0 0.0
        %1258 = vmatpush1.msra.mxu0 0.0
        %1259 = vmatprep.subr.mxu0 0.0
        %1260 = vmatpush1.msra.mxu0 0.0
        %1261 = vmatprep.subr.mxu0 0.0
        %1262 = vmatpush1.msra.mxu0 0.0
        %1263 = vmatprep.subr.mxu0 0.0
        %1264 = vmatpush1.msra.mxu0 0.0
        %1265 = vmatprep.subr.mxu0 0.0
        %1266 = vmatpush1.msra.mxu0 0.0
        %1267 = vmatprep.subr.mxu0 0.0
        %1268 = vmatpush1.msra.mxu0 0.0
        %1269 = vmatprep.subr.mxu0 0.0
        %1270 = vmatpush1.msra.mxu0 0.0
        %1271 = vmatprep.subr.mxu0 0.0
        %1272 = vmatpush1.msra.mxu0 0.0
        %1273 = vmatprep.subr.mxu0 0.0
        %1274 = vmatpush1.msra.mxu0 0.0
        %1275 = vmatprep.subr.mxu0 0.0
        %1276 = vmatpush1.msra.mxu0 0.0
        %1277 = vmatprep.subr.mxu0 0.0
        %1278 = vmatpush1.msra.mxu0 0.0
        %1279 = vmatprep.subr.mxu0 0.0
        %1280 = vmatpush1.msra.mxu0 0.0
        %1281 = vmatprep.subr.mxu0 0.0
        %1282 = vmatpush1.msra.mxu0 0.0
        %1283 = vmatprep.subr.mxu0 0.0
        %1284 = vmatpush1.msra.mxu0 0.0
        %1285 = vmatprep.mubr.f32.mxu0 0.0
        %1286 = vmatmul.mubr.f32.gmra.mrb[0].mxu0 %v1213
        %v1287 = vpop.f32.mrb[0].mxu0
        %v1288 = vadd.f32 0.0, %v1287
        %v1289 = vpop.f32.mrb[0].mxu0
        %v1290 = vadd.f32 0.0, %v1289
        %1291 = vdwg.mxu0
        %1292 = vmatprep.subr.mxu0 0.0
        %1293 = vmatpush1.msra.mxu0 %v1219
        %1294 = vmatprep.subr.mxu0 0.0
        %1295 = vmatpush1.msra.mxu0 0.0
        %1296 = vmatprep.subr.mxu0 0.0
        %1297 = vmatpush1.msra.mxu0 0.0
        %1298 = vmatprep.subr.mxu0 0.0
        %1299 = vmatpush1.msra.mxu0 0.0
        %1300 = vmatprep.subr.mxu0 0.0
        %1301 = vmatpush1.msra.mxu0 0.0
        %1302 = vmatprep.subr.mxu0 0.0
        %1303 = vmatpush1.msra.mxu0 0.0
        %1304 = vmatprep.subr.mxu0 0.0
        %1305 = vmatpush1.msra.mxu0 0.0
        %1306 = vmatprep.subr.mxu0 0.0
        %1307 = vmatpush1.msra.mxu0 0.0
        %1308 = vmatprep.subr.mxu0 0.0
        %1309 = vmatpush1.msra.mxu0 0.0
        %1310 = vmatprep.subr.mxu0 0.0
        %1311 = vmatpush1.msra.mxu0 0.0
        %1312 = vmatprep.subr.mxu0 0.0
        %1313 = vmatpush1.msra.mxu0 0.0
        %1314 = vmatprep.subr.mxu0 0.0
        %1315 = vmatpush1.msra.mxu0 0.0
        %1316 = vmatprep.subr.mxu0 0.0
        %1317 = vmatpush1.msra.mxu0 0.0
        %1318 = vmatprep.subr.mxu0 0.0
        %1319 = vmatpush1.msra.mxu0 0.0
        %1320 = vmatprep.subr.mxu0 0.0
        %1321 = vmatpush1.msra.mxu0 0.0
        %1322 = vmatprep.subr.mxu0 0.0
        %1323 = vmatpush1.msra.mxu0 0.0
        %1324 = vmatprep.subr.mxu0 0.0
        %1325 = vmatpush1.msra.mxu0 0.0
        %1326 = vmatprep.subr.mxu0 0.0
        %1327 = vmatpush1.msra.mxu0 0.0
        %1328 = vmatprep.subr.mxu0 0.0
        %1329 = vmatpush1.msra.mxu0 0.0
        %1330 = vmatprep.subr.mxu0 0.0
        %1331 = vmatpush1.msra.mxu0 0.0
        %1332 = vmatprep.subr.mxu0 0.0
        %1333 = vmatpush1.msra.mxu0 0.0
        %1334 = vmatprep.subr.mxu0 0.0
        %1335 = vmatpush1.msra.mxu0 0.0
        %1336 = vmatprep.subr.mxu0 0.0
        %1337 = vmatpush1.msra.mxu0 0.0
        %1338 = vmatprep.subr.mxu0 0.0
        %1339 = vmatpush1.msra.mxu0 0.0
        %1340 = vmatprep.subr.mxu0 0.0
        %1341 = vmatpush1.msra.mxu0 0.0
        %1342 = vmatprep.subr.mxu0 0.0
        %1343 = vmatpush1.msra.mxu0 0.0
        %1344 = vmatprep.subr.mxu0 0.0
        %1345 = vmatpush1.msra.mxu0 0.0
        %1346 = vmatprep.subr.mxu0 0.0
        %1347 = vmatpush1.msra.mxu0 0.0
        %1348 = vmatprep.subr.mxu0 0.0
        %1349 = vmatpush1.msra.mxu0 0.0
        %1350 = vmatprep.subr.mxu0 0.0
        %1351 = vmatpush1.msra.mxu0 0.0
        %1352 = vmatprep.subr.mxu0 0.0
        %1353 = vmatpush1.msra.mxu0 0.0
        %1354 = vmatprep.subr.mxu0 0.0
        %1355 = vmatpush1.msra.mxu0 0.0
        %1356 = vmatprep.mubr.f32.mxu0 0.0
        %1357 = vmatmul.mubr.f32.gmra.mrb[0].mxu0 %v1213
        %v1358 = vpop.f32.mrb[0].mxu0
        %v1359 = vadd.f32 0.0, %v1358
        %v1360 = vpop.f32.mrb[0].mxu0
        %1361 = vdwg.mxu0
        %v1362 = vadd.f32 %v1198, %v1288
        %v1363 = vadd.f32 %v1199, %v1290
        %v1364 = vadd.f32 %v1200, %v1359
        %s1365 = scalar_lea.vmem [#allocation5], 56
        %v1366 = vld [vmem:[%s1365] sm:$0xff]
        %1367 = vrot.lane.b32.xlu0 %v214, 91
        %v1368 = vpop.permute.xlu0 %1367
        %1369 = vrot.lane.b32.xlu0 %v225, 91
        %v1370 = vpop.permute.xlu0 %1369
        %1371 = vrot.lane.b32.xlu0 %v215, 91
        %v1372 = vpop.permute.xlu0 %1371
        %vm1373 = vcmask 744448
        %v1374 = vsel %vm1373, %v1368, %v1370
        %v1375 = vsel %vm1373, %v1370, %v1372
        %v1377 = vsel %vm226, %v1366, 0
        %v1379 = vsel %vm230, %v1374, 0
        %v1381 = vsel %vm230, %v1375, 0
        %v1383 = vsel %vm230, %v1372, 0
        %1385 = vmatprep.subr.mxu0 %v1381
        %1386 = vmatpush1.msra.mxu0 %v1379
        %1387 = vmatprep.subr.mxu0 0.0
        %1388 = vmatpush1.msra.mxu0 0.0
        %1389 = vmatprep.subr.mxu0 0.0
        %1390 = vmatpush1.msra.mxu0 0.0
        %1391 = vmatprep.subr.mxu0 0.0
        %1392 = vmatpush1.msra.mxu0 0.0
        %1393 = vmatprep.subr.mxu0 0.0
        %1394 = vmatpush1.msra.mxu0 0.0
        %1395 = vmatprep.subr.mxu0 0.0
        %1396 = vmatpush1.msra.mxu0 0.0
        %1397 = vmatprep.subr.mxu0 0.0
        %1398 = vmatpush1.msra.mxu0 0.0
        %1399 = vmatprep.subr.mxu0 0.0
        %1400 = vmatpush1.msra.mxu0 0.0
        %1401 = vmatprep.subr.mxu0 0.0
        %1402 = vmatpush1.msra.mxu0 0.0
        %1403 = vmatprep.subr.mxu0 0.0
        %1404 = vmatpush1.msra.mxu0 0.0
        %1405 = vmatprep.subr.mxu0 0.0
        %1406 = vmatpush1.msra.mxu0 0.0
        %1407 = vmatprep.subr.mxu0 0.0
        %1408 = vmatpush1.msra.mxu0 0.0
        %1409 = vmatprep.subr.mxu0 0.0
        %1410 = vmatpush1.msra.mxu0 0.0
        %1411 = vmatprep.subr.mxu0 0.0
        %1412 = vmatpush1.msra.mxu0 0.0
        %1413 = vmatprep.subr.mxu0 0.0
        %1414 = vmatpush1.msra.mxu0 0.0
        %1415 = vmatprep.subr.mxu0 0.0
        %1416 = vmatpush1.msra.mxu0 0.0
        %1417 = vmatprep.subr.mxu0 0.0
        %1418 = vmatpush1.msra.mxu0 0.0
        %1419 = vmatprep.subr.mxu0 0.0
        %1420 = vmatpush1.msra.mxu0 0.0
        %1421 = vmatprep.subr.mxu0 0.0
        %1422 = vmatpush1.msra.mxu0 0.0
        %1423 = vmatprep.subr.mxu0 0.0
        %1424 = vmatpush1.msra.mxu0 0.0
        %1425 = vmatprep.subr.mxu0 0.0
        %1426 = vmatpush1.msra.mxu0 0.0
        %1427 = vmatprep.subr.mxu0 0.0
        %1428 = vmatpush1.msra.mxu0 0.0
        %1429 = vmatprep.subr.mxu0 0.0
        %1430 = vmatpush1.msra.mxu0 0.0
        %1431 = vmatprep.subr.mxu0 0.0
        %1432 = vmatpush1.msra.mxu0 0.0
        %1433 = vmatprep.subr.mxu0 0.0
        %1434 = vmatpush1.msra.mxu0 0.0
        %1435 = vmatprep.subr.mxu0 0.0
        %1436 = vmatpush1.msra.mxu0 0.0
        %1437 = vmatprep.subr.mxu0 0.0
        %1438 = vmatpush1.msra.mxu0 0.0
        %1439 = vmatprep.subr.mxu0 0.0
        %1440 = vmatpush1.msra.mxu0 0.0
        %1441 = vmatprep.subr.mxu0 0.0
        %1442 = vmatpush1.msra.mxu0 0.0
        %1443 = vmatprep.subr.mxu0 0.0
        %1444 = vmatpush1.msra.mxu0 0.0
        %1445 = vmatprep.subr.mxu0 0.0
        %1446 = vmatpush1.msra.mxu0 0.0
        %1447 = vmatprep.subr.mxu0 0.0
        %1448 = vmatpush1.msra.mxu0 0.0
        %1449 = vmatprep.mubr.f32.mxu0 0.0
        %1450 = vmatmul.mubr.f32.gmra.mrb[0].mxu0 %v1377
        %v1451 = vpop.f32.mrb[0].mxu0
        %v1452 = vadd.f32 0.0, %v1451
        %v1453 = vpop.f32.mrb[0].mxu0
        %v1454 = vadd.f32 0.0, %v1453
        %1455 = vdwg.mxu0
        %1456 = vmatprep.subr.mxu0 0.0
        %1457 = vmatpush1.msra.mxu0 %v1383
        %1458 = vmatprep.subr.mxu0 0.0
        %1459 = vmatpush1.msra.mxu0 0.0
        %1460 = vmatprep.subr.mxu0 0.0
        %1461 = vmatpush1.msra.mxu0 0.0
        %1462 = vmatprep.subr.mxu0 0.0
        %1463 = vmatpush1.msra.mxu0 0.0
        %1464 = vmatprep.subr.mxu0 0.0
        %1465 = vmatpush1.msra.mxu0 0.0
        %1466 = vmatprep.subr.mxu0 0.0
        %1467 = vmatpush1.msra.mxu0 0.0
        %1468 = vmatprep.subr.mxu0 0.0
        %1469 = vmatpush1.msra.mxu0 0.0
        %1470 = vmatprep.subr.mxu0 0.0
        %1471 = vmatpush1.msra.mxu0 0.0
        %1472 = vmatprep.subr.mxu0 0.0
        %1473 = vmatpush1.msra.mxu0 0.0
        %1474 = vmatprep.subr.mxu0 0.0
        %1475 = vmatpush1.msra.mxu0 0.0
        %1476 = vmatprep.subr.mxu0 0.0
        %1477 = vmatpush1.msra.mxu0 0.0
        %1478 = vmatprep.subr.mxu0 0.0
        %1479 = vmatpush1.msra.mxu0 0.0
        %1480 = vmatprep.subr.mxu0 0.0
        %1481 = vmatpush1.msra.mxu0 0.0
        %1482 = vmatprep.subr.mxu0 0.0
        %1483 = vmatpush1.msra.mxu0 0.0
        %1484 = vmatprep.subr.mxu0 0.0
        %1485 = vmatpush1.msra.mxu0 0.0
        %1486 = vmatprep.subr.mxu0 0.0
        %1487 = vmatpush1.msra.mxu0 0.0
        %1488 = vmatprep.subr.mxu0 0.0
        %1489 = vmatpush1.msra.mxu0 0.0
        %1490 = vmatprep.subr.mxu0 0.0
        %1491 = vmatpush1.msra.mxu0 0.0
        %1492 = vmatprep.subr.mxu0 0.0
        %1493 = vmatpush1.msra.mxu0 0.0
        %1494 = vmatprep.subr.mxu0 0.0
        %1495 = vmatpush1.msra.mxu0 0.0
        %1496 = vmatprep.subr.mxu0 0.0
        %1497 = vmatpush1.msra.mxu0 0.0
        %1498 = vmatprep.subr.mxu0 0.0
        %1499 = vmatpush1.msra.mxu0 0.0
        %1500 = vmatprep.subr.mxu0 0.0
        %1501 = vmatpush1.msra.mxu0 0.0
        %1502 = vmatprep.subr.mxu0 0.0
        %1503 = vmatpush1.msra.mxu0 0.0
        %1504 = vmatprep.subr.mxu0 0.0
        %1505 = vmatpush1.msra.mxu0 0.0
        %1506 = vmatprep.subr.mxu0 0.0
        %1507 = vmatpush1.msra.mxu0 0.0
        %1508 = vmatprep.subr.mxu0 0.0
        %1509 = vmatpush1.msra.mxu0 0.0
        %1510 = vmatprep.subr.mxu0 0.0
        %1511 = vmatpush1.msra.mxu0 0.0
        %1512 = vmatprep.subr.mxu0 0.0
        %1513 = vmatpush1.msra.mxu0 0.0
        %1514 = vmatprep.subr.mxu0 0.0
        %1515 = vmatpush1.msra.mxu0 0.0
        %1516 = vmatprep.subr.mxu0 0.0
        %1517 = vmatpush1.msra.mxu0 0.0
        %1518 = vmatprep.subr.mxu0 0.0
        %1519 = vmatpush1.msra.mxu0 0.0
        %1520 = vmatprep.mubr.f32.mxu0 0.0
        %1521 = vmatmul.mubr.f32.gmra.mrb[0].mxu0 %v1377
        %v1522 = vpop.f32.mrb[0].mxu0
        %v1523 = vadd.f32 0.0, %v1522
        %v1524 = vpop.f32.mrb[0].mxu0
        %1525 = vdwg.mxu0
        %v1526 = vadd.f32 %v1362, %v1452
        %v1527 = vadd.f32 %v1363, %v1454
        %v1528 = vadd.f32 %v1364, %v1523
        %s1529 = scalar_lea.vmem [#allocation5], 64
        %v1530 = vld [vmem:[%s1529] sm:$0xff]
        %1531 = vrot.lane.b32.xlu0 %v214, 90
        %v1532 = vpop.permute.xlu0 %1531
        %1533 = vrot.lane.b32.xlu0 %v225, 90
        %v1534 = vpop.permute.xlu0 %1533
        %1535 = vrot.lane.b32.xlu0 %v215, 90
        %v1536 = vpop.permute.xlu0 %1535
        %vm1537 = vcmask 736256
        %v1538 = vsel %vm1537, %v1532, %v1534
        %v1539 = vsel %vm1537, %v1534, %v1536
        %v1541 = vsel %vm226, %v1530, 0
        %v1543 = vsel %vm230, %v1538, 0
        %v1545 = vsel %vm230, %v1539, 0
        %v1547 = vsel %vm230, %v1536, 0
        %1549 = vmatprep.subr.mxu0 %v1545
        %1550 = vmatpush1.msra.mxu0 %v1543
        %1551 = vmatprep.subr.mxu0 0.0
        %1552 = vmatpush1.msra.mxu0 0.0
        %1553 = vmatprep.subr.mxu0 0.0
        %1554 = vmatpush1.msra.mxu0 0.0
        %1555 = vmatprep.subr.mxu0 0.0
        %1556 = vmatpush1.msra.mxu0 0.0
        %1557 = vmatprep.subr.mxu0 0.0
        %1558 = vmatpush1.msra.mxu0 0.0
        %1559 = vmatprep.subr.mxu0 0.0
        %1560 = vmatpush1.msra.mxu0 0.0
        %1561 = vmatprep.subr.mxu0 0.0
        %1562 = vmatpush1.msra.mxu0 0.0
        %1563 = vmatprep.subr.mxu0 0.0
        %1564 = vmatpush1.msra.mxu0 0.0
        %1565 = vmatprep.subr.mxu0 0.0
        %1566 = vmatpush1.msra.mxu0 0.0
        %1567 = vmatprep.subr.mxu0 0.0
        %1568 = vmatpush1.msra.mxu0 0.0
        %1569 = vmatprep.subr.mxu0 0.0
        %1570 = vmatpush1.msra.mxu0 0.0
        %1571 = vmatprep.subr.mxu0 0.0
        %1572 = vmatpush1.msra.mxu0 0.0
        %1573 = vmatprep.subr.mxu0 0.0
        %1574 = vmatpush1.msra.mxu0 0.0
        %1575 = vmatprep.subr.mxu0 0.0
        %1576 = vmatpush1.msra.mxu0 0.0
        %1577 = vmatprep.subr.mxu0 0.0
        %1578 = vmatpush1.msra.mxu0 0.0
        %1579 = vmatprep.subr.mxu0 0.0
        %1580 = vmatpush1.msra.mxu0 0.0
        %1581 = vmatprep.subr.mxu0 0.0
        %1582 = vmatpush1.msra.mxu0 0.0
        %1583 = vmatprep.subr.mxu0 0.0
        %1584 = vmatpush1.msra.mxu0 0.0
        %1585 = vmatprep.subr.mxu0 0.0
        %1586 = vmatpush1.msra.mxu0 0.0
        %1587 = vmatprep.subr.mxu0 0.0
        %1588 = vmatpush1.msra.mxu0 0.0
        %1589 = vmatprep.subr.mxu0 0.0
        %1590 = vmatpush1.msra.mxu0 0.0
        %1591 = vmatprep.subr.mxu0 0.0
        %1592 = vmatpush1.msra.mxu0 0.0
        %1593 = vmatprep.subr.mxu0 0.0
        %1594 = vmatpush1.msra.mxu0 0.0
        %1595 = vmatprep.subr.mxu0 0.0
        %1596 = vmatpush1.msra.mxu0 0.0
        %1597 = vmatprep.subr.mxu0 0.0
        %1598 = vmatpush1.msra.mxu0 0.0
        %1599 = vmatprep.subr.mxu0 0.0
        %1600 = vmatpush1.msra.mxu0 0.0
        %1601 = vmatprep.subr.mxu0 0.0
        %1602 = vmatpush1.msra.mxu0 0.0
        %1603 = vmatprep.subr.mxu0 0.0
        %1604 = vmatpush1.msra.mxu0 0.0
        %1605 = vmatprep.subr.mxu0 0.0
        %1606 = vmatpush1.msra.mxu0 0.0
        %1607 = vmatprep.subr.mxu0 0.0
        %1608 = vmatpush1.msra.mxu0 0.0
        %1609 = vmatprep.subr.mxu0 0.0
        %1610 = vmatpush1.msra.mxu0 0.0
        %1611 = vmatprep.subr.mxu0 0.0
        %1612 = vmatpush1.msra.mxu0 0.0
        %1613 = vmatprep.mubr.f32.mxu0 0.0
        %1614 = vmatmul.mubr.f32.gmra.mrb[0].mxu0 %v1541
        %v1615 = vpop.f32.mrb[0].mxu0
        %v1616 = vadd.f32 0.0, %v1615
        %v1617 = vpop.f32.mrb[0].mxu0
        %v1618 = vadd.f32 0.0, %v1617
        %1619 = vdwg.mxu0
        %1620 = vmatprep.subr.mxu0 0.0
        %1621 = vmatpush1.msra.mxu0 %v1547
        %1622 = vmatprep.subr.mxu0 0.0
        %1623 = vmatpush1.msra.mxu0 0.0
        %1624 = vmatprep.subr.mxu0 0.0
        %1625 = vmatpush1.msra.mxu0 0.0
        %1626 = vmatprep.subr.mxu0 0.0
        %1627 = vmatpush1.msra.mxu0 0.0
        %1628 = vmatprep.subr.mxu0 0.0
        %1629 = vmatpush1.msra.mxu0 0.0
        %1630 = vmatprep.subr.mxu0 0.0
        %1631 = vmatpush1.msra.mxu0 0.0
        %1632 = vmatprep.subr.mxu0 0.0
        %1633 = vmatpush1.msra.mxu0 0.0
        %1634 = vmatprep.subr.mxu0 0.0
        %1635 = vmatpush1.msra.mxu0 0.0
        %1636 = vmatprep.subr.mxu0 0.0
        %1637 = vmatpush1.msra.mxu0 0.0
        %1638 = vmatprep.subr.mxu0 0.0
        %1639 = vmatpush1.msra.mxu0 0.0
        %1640 = vmatprep.subr.mxu0 0.0
        %1641 = vmatpush1.msra.mxu0 0.0
        %1642 = vmatprep.subr.mxu0 0.0
        %1643 = vmatpush1.msra.mxu0 0.0
        %1644 = vmatprep.subr.mxu0 0.0
        %1645 = vmatpush1.msra.mxu0 0.0
        %1646 = vmatprep.subr.mxu0 0.0
        %1647 = vmatpush1.msra.mxu0 0.0
        %1648 = vmatprep.subr.mxu0 0.0
        %1649 = vmatpush1.msra.mxu0 0.0
        %1650 = vmatprep.subr.mxu0 0.0
        %1651 = vmatpush1.msra.mxu0 0.0
        %1652 = vmatprep.subr.mxu0 0.0
        %1653 = vmatpush1.msra.mxu0 0.0
        %1654 = vmatprep.subr.mxu0 0.0
        %1655 = vmatpush1.msra.mxu0 0.0
        %1656 = vmatprep.subr.mxu0 0.0
        %1657 = vmatpush1.msra.mxu0 0.0
        %1658 = vmatprep.subr.mxu0 0.0
        %1659 = vmatpush1.msra.mxu0 0.0
        %1660 = vmatprep.subr.mxu0 0.0
        %1661 = vmatpush1.msra.mxu0 0.0
        %1662 = vmatprep.subr.mxu0 0.0
        %1663 = vmatpush1.msra.mxu0 0.0
        %1664 = vmatprep.subr.mxu0 0.0
        %1665 = vmatpush1.msra.mxu0 0.0
        %1666 = vmatprep.subr.mxu0 0.0
        %1667 = vmatpush1.msra.mxu0 0.0
        %1668 = vmatprep.subr.mxu0 0.0
        %1669 = vmatpush1.msra.mxu0 0.0
        %1670 = vmatprep.subr.mxu0 0.0
        %1671 = vmatpush1.msra.mxu0 0.0
        %1672 = vmatprep.subr.mxu0 0.0
        %1673 = vmatpush1.msra.mxu0 0.0
        %1674 = vmatprep.subr.mxu0 0.0
        %1675 = vmatpush1.msra.mxu0 0.0
        %1676 = vmatprep.subr.mxu0 0.0
        %1677 = vmatpush1.msra.mxu0 0.0
        %1678 = vmatprep.subr.mxu0 0.0
        %1679 = vmatpush1.msra.mxu0 0.0
        %1680 = vmatprep.subr.mxu0 0.0
        %1681 = vmatpush1.msra.mxu0 0.0
        %1682 = vmatprep.subr.mxu0 0.0
        %1683 = vmatpush1.msra.mxu0 0.0
        %1684 = vmatprep.mubr.f32.mxu0 0.0
        %1685 = vmatmul.mubr.f32.gmra.mrb[0].mxu0 %v1541
        %v1686 = vpop.f32.mrb[0].mxu0
        %v1687 = vadd.f32 0.0, %v1686
        %v1688 = vpop.f32.mrb[0].mxu0
        %1689 = vdwg.mxu0
        %v1690 = vadd.f32 %v1526, %v1616
        %v1691 = vadd.f32 %v1527, %v1618
        %v1692 = vadd.f32 %v1528, %v1687
        %vm1693 = vcmp.gt.f32.partialorder %v1690, 0.0
        %vm1694 = vcmp.gt.f32.partialorder %v1691, 0.0
        %vm1695 = vcmp.gt.f32.partialorder %v1692, 0.0
        %v1696 = vmul.f32 %v1690, 0.1
        %v1697 = vmul.f32 %v1691, 0.1
        %v1698 = vmul.f32 %v1692, 0.1
        %v1699 = vsel %vm1693, %v1690, %v1696
        %v1700 = vsel %vm1694, %v1691, %v1697
        %v1701 = vsel %vm1695, %v1692, %v1698
        %1702 = vst [vmem:[%s213] sm:$0xff] %v1699
        %1703 = vst [vmem:[%s213 + $0x8] sm:$0xff] %v1700
        %vm1704 = vcmask 261120
        %1705 = vst.msk [vmem:[%s213 + $0x10] sm:$0xff] %vm1704, %v1701
        %s1706 = sand.u32 %s97, 1
        %s1707 = scalar_lea.sflag [#allocation4], %s1706
        %s1708 = sand.u32 %s97, 1
        %s1709 = smul.addr %s1708, 24
        %s1710 = scalar_lea.vmem [#allocation8], %s1709
        // Predicated region
        $region45: #{conv_bn_forward.1} parent=31 // pred_check
          %p1711 = pneg %p107
        $region46: #{conv_bn_forward.1} parent=31 // pred_check_branch
          %1713 = sbr.rel (%p1711) target = $region48
        $region47: #{conv_bn_forward.1} parent=31 // pred_region
          %s1715 = ssub.s32 384, 384
          %1716 = vsyncadd %s1707, %s1715
          %s1717 = smul.addr %s21, 3
          %s1718 = smul.addr %s1717, 128
          %s1719 = scalar_lea.hbm %s3, %s1718
          %s1721 = sshll.u32 %s1710, 4
          %s1722 = int_to_ptr.vmem [resolvable:$true] %s1721
          %1724 = dma.vmem_to_hbm [thread:$0]  %s1722, 384, %s1719, %s1707
        $region48: #{conv_bn_forward.1} parent=31 // pred_fallthru
          _
      $region32: #{conv_bn_forward.1} parent=5 // pred_fallthru
        _
      %p1725 = scmp.le.s32.totalorder 2, %s16
      // Predicated region
      $region49: #{conv_bn_forward.1} parent=5 // pred_check
        %p1726 = pneg %p1725
      $region50: #{conv_bn_forward.1} parent=5 // pred_check_branch
        %1728 = sbr.rel (%p1726) target = $region52
      $region51: #{conv_bn_forward.1} parent=5 // pred_region
        %s1729 = ssub.s32 %s16, 2
        // Predicated region
        $region53: #{conv_bn_forward.1} parent=51 // pred_check
          %p1730 = pneg %p113
        $region54: #{conv_bn_forward.1} parent=51 // pred_check_branch
          %1732 = sbr.rel (%p1730) target = $region56
        $region55: #{conv_bn_forward.1} parent=51 // pred_region
          %s1733 = sand.u32 %s98, 1
          %s1734 = scalar_lea.sflag [#allocation4], %s1733
          %s1735 = sand.u32 %s98, 1
          %s1736 = smul.addr %s1735, 24
          %s1737 = scalar_lea.vmem [#allocation8], %s1736
          %1738 = dma.done %s1734, 384
        $region56: #{conv_bn_forward.1} parent=51 // pred_fallthru
          _
      $region52: #{conv_bn_forward.1} parent=5 // pred_fallthru
        _
    $region6: #{conv_bn_forward.1} parent=1 // loop_footer
      %s20 = sadd.s32 1, %s16
    $region7: #{conv_bn_forward.1} parent=1 // loop_footer_branch
      %15 = sbr.rel target = $region3
    $region8: #{conv_bn_forward.1} parent=1 // loop_exit
      _
    %1739 = vsyncpa [#allocation3], 1
    %s1740 = scalar_lea.sflag [#allocation3], 1
    %1741 = vsyncpa %s1740, 1
    %1742 = vsyncpa [#allocation6], 1
    %1743 = vsyncpa [#allocation4], 1
    %s1744 = scalar_lea.sflag [#allocation4], 1
    %1745 = vsyncpa %s1744, 1

</llo_original>
